<compile_context>
chip_gen: v7x
topology: tpu7x:2x2x1
jax: 0.10.0
libtpu: 0.0.40
codegen_flags: <defaults>
</compile_context>

<pallas_src>
import numpy as np
import jax
import jax.numpy as jnp
from jax.experimental import pallas as pl
from jax.experimental.pallas import tpu as pltpu


def gaussian_kernel_3d(size: int, sigma=3.0, gamma_y=1.0, gamma_z=1.0) -> np.ndarray:
    """Exact replica of Conv3dGaussian.init_kernel, including the F.normalize
    semantics (p=2 normalization over dim=1 with eps=1e-12)."""
    sigma_x = sigma
    sigma_y = sigma * gamma_y
    sigma_z = sigma * gamma_z
    c = int(size / 2)
    r = np.arange(-c, c + 1, dtype=np.float32)
    x, y, z = np.meshgrid(r, r, r, indexing="ij")
    k = np.exp(-0.5 * (x ** 2 / sigma_x ** 2 + y ** 2 / sigma_y ** 2 + z ** 2 / sigma_z ** 2))
    norm = np.sqrt(np.sum(k ** 2, axis=1, keepdims=True))  # torch F.normalize: p=2, dim=1
    k = k / np.maximum(norm, 1e-12)
    return k.astype(np.float32)  # (kD, kH, kW)


def separable_weights(size: int, sigma, gamma_y, gamma_z):
    """Returns (w_full, wh): the module's exact weight and its 1-D factor along
    kH; asserts the separability that F.normalize(dim=1) induces."""
    w_full = gaussian_kernel_3d(size, sigma, gamma_y, gamma_z)
    c = size // 2
    wh = w_full[c, :, c].copy()
    assert np.allclose(
        w_full, np.broadcast_to(wh[None, :, None], w_full.shape), rtol=1e-5, atol=1e-7
    ), "weight unexpectedly not constant along kD/kW; separable fast path invalid"
    return w_full, wh


def _round_up(x: int, m: int) -> int:
    return ((x + m - 1) // m) * m


def _vmem_capacity_bytes() -> int:
    try:
        info = pltpu.get_tpu_info()
        cap = int(getattr(info, "vmem_capacity_bytes", 0))
        if cap > 0:
            return cap
    except Exception:
        pass
    return 64 << 20  # conservative (v7x-sized) fallback


def make_conv3d_gaussian(size: int = 3, sigma=3.0, gamma_y=1.0, gamma_z=1.0,
                         padding=None, d_tile=None):
    """conv(x): (N, 1, D, H, W) f32 -> (N, 1, D-k+1, H-k+1, W-k+1) f32
    (after optional symmetric zero padding, matching F.conv3d(padding=p)).
    `d_tile` optionally overrides the output-D tile size (rounded to a multiple
    of k-1)."""
    assert size % 2 == 1 and size >= 3, "kernel size must be odd (and >= 3)"
    _, wh_np = separable_weights(size, sigma, gamma_y, gamma_z)
    wh = [float(v) for v in wh_np]   # baked Gaussian taps along kH
    k = size
    q = k - 1                        # halo rows along D
    pad = int(padding) if padding else 0

    def conv(x):
        x = x.astype(jnp.float32)
        N, C, D0, H0, W0 = x.shape
        assert C == 1, "Conv3dGaussian has a single (1,1,k,k,k) filter"
        D1, H1, W1 = D0 + 2 * pad, H0 + 2 * pad, W0 + 2 * pad
        Do, Ho, Wo = D1 - k + 1, H1 - k + 1, W1 - k + 1
        assert Do > 0 and Ho > 0 and Wo > 0
        Wo_pad = _round_up(Wo, 128)            # lane-dense (unmasked) output stores

        # ---- per-step VMEM footprint model: double-buffered blocks + the
        #      kernel's own intermediates (hi/lo, yw, yh scratch, out). ----
        def step_bytes(td):
            in_a = td * H1 * W1 * 4
            in_b = q * H1 * W1 * 4
            outb = td * Ho * Wo_pad * 4
            band = 2 * W1 * Wo_pad * 2
            scratch = (td + q) * Ho * Wo_pad * 4
            temps = 3 * in_a + td * H1 * Wo_pad * 4 + outb
            return 2 * (in_a + in_b + outb + band) + scratch + temps

        vmem_cap = _vmem_capacity_bytes()
        # ~83 MiB budget on v5e/v6e (128 MiB VMEM), ~41 MiB on v7x (64 MiB).
        budget = int(vmem_cap * 0.65)

        # ---- choose the output-D tile: a multiple of (k-1) so the halo slab is
        #      Blocked-addressable; prefer divisors of Do (no structural pad);
        #      keep the grid >= 4 steps when tiles stay reasonably large. ----
        if d_tile is not None:
            td = max(q, (int(d_tile) // q) * q)
            td = min(td, max(q, (Do // q) * q))
        else:
            hi_t = max(q, (Do // q) * q)
            cands = list(range(hi_t, 0, -q))
            fit = [t for t in cands if step_bytes(t) <= budget] or [cands[-1]]
            td = fit[0]
            divs = [t for t in fit if Do % t == 0]
            if divs and divs[0] * 2 >= td:
                td = divs[0]                      # close to optimal, avoids host pad
            if N * (-(-Do // td)) < 4:            # prefer >= 4 grid steps (pipelining, v7x)
                for t in fit:
                    if (N * (-(-Do // t)) >= 4 and step_bytes(t) >= (2 << 20)
                            and (Do % t == 0 or Do % td != 0)):
                        td = t
                        break

        nD = -(-Do // td)
        Do_pad = nD * td
        extra_d = Do_pad + q - D1                 # so the last halo slab stays in-bounds

        if pad or extra_d > 0:
            # TODO(synk): fold the symmetric conv padding into the kernel's edge
            # tiles (index clamp + mask) instead of this extra HBM pass.
            x = jnp.pad(x, ((0, 0), (0, 0),
                            (pad, pad + max(extra_d, 0)),
                            (pad, pad), (pad, pad)))
        D_in = D1 + max(extra_d, 0)
        x_r = x.reshape(N, D_in, H1, W1)          # squeeze channel dim (free)

        # ---- (W, Wo_pad) 0/1 band: column j sums input columns j..j+k-1; the
        #      zero columns j >= Wo give a lane-aligned, zero-padded output. ----
        band_np = np.zeros((W1, Wo_pad), np.float32)
        for j in range(Wo):
            band_np[j:j + k, j] = 1.0
        fuse_k = (W1 % 128 == 0)                  # lane-aligned -> fuse hi/lo into one dot
        band_host = np.concatenate([band_np, band_np], axis=0) if fuse_k else band_np
        band_j = jnp.asarray(band_host, dtype=jnp.bfloat16)  # pre-cast on host
        band_rows = band_host.shape[0]

        vmem_limit = int(min(max(int(step_bytes(td) * 1.25), 32 << 20),
                             int(vmem_cap * 0.9)))
        m_halo = td // q

        def process(x3, band):
            """(rows, H1, W1) f32 -> (rows, Ho, Wo_pad) f32: W box-sum (MXU) + H
            Gaussian pass. Exact bf16 hi/lo split: products vs. a 0/1 band are
            exact in bf16, accumulation is f32."""
            rows = x3.shape[0]
            x2 = x3.reshape(rows * H1, W1)
            hi = x2.astype(jnp.bfloat16)
            lo = (x2 - hi.astype(jnp.float32)).astype(jnp.bfloat16)
            if fuse_k:
                yw = jnp.dot(jnp.concatenate([hi, lo], axis=1), band,
                             preferred_element_type=jnp.float32)
            else:
                yw = (jnp.dot(hi, band, preferred_element_type=jnp.float32)
                      + jnp.dot(lo, band, preferred_element_type=jnp.float32))
            yw3 = yw.reshape(rows, H1, Wo_pad)
            yh = wh[0] * yw3[:, 0:Ho, :]
            for kh in range(1, k):
                yh = yh + wh[kh] * yw3[:, kh:kh + Ho, :]
            return yh

        def kernel(band_ref, xa_ref, xb_ref, o_ref, yh_ref):
            band = band_ref[...]
            # Main slab (td input rows along D) and its (k-1)-row halo, staged
            # through a VMEM scratch so yw/yh/out are not all live at once.
            yh_ref[pl.ds(0, td), :, :] = process(xa_ref[...], band)
            yh_ref[pl.ds(td, q), :, :] = process(xb_ref[...], band)
            # D pass: k-tap box-sum along the leading (untiled) axis.
            out = yh_ref[pl.ds(0, td), :, :]
            for kd in range(1, k):
                out = out + yh_ref[pl.ds(kd, td), :, :]
            o_ref[...] = out.astype(o_ref.dtype)

        out = pl.pallas_call(
            kernel,
            out_shape=jax.ShapeDtypeStruct((N, Do_pad, Ho, Wo_pad), jnp.float32),
            grid_spec=pltpu.PrefetchScalarGridSpec(
                num_scalar_prefetch=0,
                grid=(N, nD),
                in_specs=[
                    # band: constant block -> fetched once, stays resident.
                    pl.BlockSpec((band_rows, Wo_pad), lambda b, d: (0, 0)),
                    # main D slab: td rows starting at d*td.
                    pl.BlockSpec((None, td, H1, W1), lambda b, d: (b, d, 0, 0)),
                    # halo: the (k-1) rows starting at (d+1)*td, addressed as a
                    # Blocked block of size (k-1) (td is a multiple of k-1).
                    pl.BlockSpec((None, q, H1, W1),
                                 lambda b, d: (b, (d + 1) * m_halo, 0, 0)),
                ],
                out_specs=pl.BlockSpec((None, td, Ho, Wo_pad),
                                       lambda b, d: (b, d, 0, 0)),
                scratch_shapes=[pltpu.VMEM((td + q, Ho, Wo_pad), jnp.float32)],
            ),
            compiler_params=pltpu.CompilerParams(
                dimension_semantics=("parallel", "parallel"),
                vmem_limit_bytes=vmem_limit,
            ),
        )(band_j, x_r, x_r)

        out = out[:, :Do, :, :Wo]                 # crop structural D pad + lane pad
        return out.reshape(N, 1, Do, Ho, Wo)

    return conv


if __name__ == "__main__":
    SIZE = 3      # kernel size (odd)
    SIGMA = 3.0
    N, C, D, H, W = 2, 1, 16, 16, 16

    key = jax.random.PRNGKey(0)
    x = jax.random.normal(key, (N, C, D, H, W), dtype=jnp.float32)

    w_full, _ = separable_weights(SIZE, SIGMA, 1.0, 1.0)
    w_ref = jnp.asarray(w_full).reshape(1, 1, SIZE, SIZE, SIZE)

    def reference(xin, padding):
        padcfg = "VALID" if padding == 0 else [(padding, padding)] * 3
        return jax.lax.conv_general_dilated(
            xin, w_ref, window_strides=(1, 1, 1), padding=padcfg,
            dimension_numbers=("NCDHW", "OIDHW", "NCDHW"),
            precision=jax.lax.Precision.HIGHEST,
        )

    # ---- padding = 0 (module default), single D tile ----
    conv = make_conv3d_gaussian(size=SIZE, sigma=SIGMA, gamma_y=1.0, gamma_z=1.0)
    out = jax.block_until_ready(conv(x))
    ref = reference(x, 0)
    assert out.shape == (N, 1, D - SIZE + 1, H - SIZE + 1, W - SIZE + 1)
    np.testing.assert_allclose(np.asarray(out), np.asarray(ref), atol=1e-3, rtol=1e-3)

    # ---- padding = 1 (exercises the module's optional padding path) ----
    conv_p = make_conv3d_gaussian(size=SIZE, sigma=SIGMA, gamma_y=1.0, gamma_z=1.0, padding=1)
    out_p = jax.block_until_ready(conv_p(x))
    ref_p = reference(x, 1)
    assert out_p.shape == (N, 1, D, H, W)
    np.testing.assert_allclose(np.asarray(out_p), np.asarray(ref_p), atol=1e-3, rtol=1e-3)

    # ---- forced small D tile: exercises the multi-D-tile halo path and the
    #      structural D pad (Do=14 not divisible by 4). ----
    conv_t = make_conv3d_gaussian(size=SIZE, sigma=SIGMA, gamma_y=1.0, gamma_z=1.0, d_tile=4)
    out_t = jax.block_until_ready(conv_t(x))
    np.testing.assert_allclose(np.asarray(out_t), np.asarray(ref), atol=1e-3, rtol=1e-3)

    print("KERNEL_OK")
</pallas_src>

<mosaic_0001>
module attributes {stable_mosaic.version = 11 : i64} {
  func.func @kernel(%arg0: i32, %arg1: i32, %arg2: memref<16x128xbf16, #tpu.memory_space<vmem>>, %arg3: memref<1x14x16x16xf32, #tpu.memory_space<vmem>>, %arg4: memref<1x2x16x16xf32, #tpu.memory_space<vmem>>, %arg5: memref<1x14x14x128xf32, #tpu.memory_space<vmem>>, %arg6: memref<16x14x128xf32, #tpu.memory_space<vmem>>) attributes {dimension_semantics = [#tpu.dimension_semantics<parallel>, #tpu.dimension_semantics<parallel>], iteration_bounds = array<i64: 2, 1>, scalar_prefetch = 0 : i64, scratch_operands = 1 : i64, tpu.core_type = #tpu.core_type<tc>, window_params = [{pipeline_mode = #tpu.pipeline_mode<synchronous>, transform_indices = @transform_0, window_bounds = array<i64: 16, 128>}, {transform_indices = @transform_1, window_bounds = array<i64: 1, 14, 16, 16>}, {transform_indices = @transform_2, window_bounds = array<i64: 1, 2, 16, 16>}, {transform_indices = @transform_3, window_bounds = array<i64: 1, 14, 14, 128>}]} {
    %c0 = arith.constant 0 : index
    %c0_0 = arith.constant 0 : index
    %0 = vector.load %arg2[%c0, %c0_0] : memref<16x128xbf16, #tpu.memory_space<vmem>>, vector<16x128xbf16>
    %c0_1 = arith.constant 0 : index
    %c0_2 = arith.constant 0 : index
    %c0_3 = arith.constant 0 : index
    %c0_4 = arith.constant 0 : index
    %1 = vector.load %arg3[%c0_1, %c0_2, %c0_3, %c0_4] : memref<1x14x16x16xf32, #tpu.memory_space<vmem>>, vector<1x14x16x16xf32>
    %2 = vector.shape_cast %1 : vector<1x14x16x16xf32> to vector<14x16x16xf32>
    %3 = vector.shape_cast %2 : vector<14x16x16xf32> to vector<224x16xf32>
    %4 = arith.truncf %3 : vector<224x16xf32> to vector<224x16xbf16>
    %5 = arith.extf %4 : vector<224x16xbf16> to vector<224x16xf32>
    %6 = arith.subf %3, %5 : vector<224x16xf32>
    %7 = arith.truncf %6 : vector<224x16xf32> to vector<224x16xbf16>
    %cst = arith.constant dense<0.000000e+00> : vector<224x128xf32>
    %8 = tpu.matmul %4, %0, %cst {dimension_numbers = #tpu.dot_dimension_numbers<[1], [0], [0], [1], [0, 0, 1, 1], [], []>} : vector<224x16xbf16>, vector<16x128xbf16>, vector<224x128xf32> -> vector<224x128xf32>
    %cst_5 = arith.constant dense<0.000000e+00> : vector<224x128xf32>
    %9 = tpu.matmul %7, %0, %cst_5 {dimension_numbers = #tpu.dot_dimension_numbers<[1], [0], [0], [1], [0, 0, 1, 1], [], []>} : vector<224x16xbf16>, vector<16x128xbf16>, vector<224x128xf32> -> vector<224x128xf32>
    %10 = arith.addf %8, %9 : vector<224x128xf32>
    %11 = vector.shape_cast %10 : vector<224x128xf32> to vector<14x16x128xf32>
    %12 = vector.extract_strided_slice %11 {offsets = [0, 0, 0], sizes = [14, 14, 128], strides = [1, 1, 1]} : vector<14x16x128xf32> to vector<14x14x128xf32>
    %cst_6 = arith.constant 0.566363692 : f32
    %13 = vector.broadcast %cst_6 : f32 to vector<14x14x128xf32>
    %14 = arith.mulf %13, %12 : vector<14x14x128xf32>
    %15 = vector.extract_strided_slice %11 {offsets = [0, 1, 0], sizes = [14, 14, 128], strides = [1, 1, 1]} : vector<14x16x128xf32> to vector<14x14x128xf32>
    %cst_7 = arith.constant 0.598718822 : f32
    %16 = vector.broadcast %cst_7 : f32 to vector<14x14x128xf32>
    %17 = arith.mulf %16, %15 : vector<14x14x128xf32>
    %18 = arith.addf %14, %17 : vector<14x14x128xf32>
    %19 = vector.extract_strided_slice %11 {offsets = [0, 2, 0], sizes = [14, 14, 128], strides = [1, 1, 1]} : vector<14x16x128xf32> to vector<14x14x128xf32>
    %cst_8 = arith.constant 0.566363692 : f32
    %20 = vector.broadcast %cst_8 : f32 to vector<14x14x128xf32>
    %21 = arith.mulf %20, %19 : vector<14x14x128xf32>
    %22 = arith.addf %18, %21 : vector<14x14x128xf32>
    %c0_9 = arith.constant 0 : index
    %c0_10 = arith.constant 0 : index
    %c0_11 = arith.constant 0 : index
    %23 = vector.load %arg6[%c0_9, %c0_10, %c0_11] : memref<16x14x128xf32, #tpu.memory_space<vmem>>, vector<14x14x128xf32>
    tpu.vector_store %arg6[%c0_9, %c0_10, %c0_11], %22 {strides = array<i32>} : memref<16x14x128xf32, #tpu.memory_space<vmem>>, vector<14x14x128xf32>,
    %c0_12 = arith.constant 0 : index
    %c0_13 = arith.constant 0 : index
    %c0_14 = arith.constant 0 : index
    %c0_15 = arith.constant 0 : index
    %24 = vector.load %arg4[%c0_12, %c0_13, %c0_14, %c0_15] : memref<1x2x16x16xf32, #tpu.memory_space<vmem>>, vector<1x2x16x16xf32>
    %25 = vector.shape_cast %24 : vector<1x2x16x16xf32> to vector<2x16x16xf32>
    %26 = vector.shape_cast %25 : vector<2x16x16xf32> to vector<32x16xf32>
    %27 = arith.truncf %26 : vector<32x16xf32> to vector<32x16xbf16>
    %28 = arith.extf %27 : vector<32x16xbf16> to vector<32x16xf32>
    %29 = arith.subf %26, %28 : vector<32x16xf32>
    %30 = arith.truncf %29 : vector<32x16xf32> to vector<32x16xbf16>
    %cst_16 = arith.constant dense<0.000000e+00> : vector<32x128xf32>
    %31 = tpu.matmul %27, %0, %cst_16 {dimension_numbers = #tpu.dot_dimension_numbers<[1], [0], [0], [1], [0, 0, 1, 1], [], []>} : vector<32x16xbf16>, vector<16x128xbf16>, vector<32x128xf32> -> vector<32x128xf32>
    %cst_17 = arith.constant dense<0.000000e+00> : vector<32x128xf32>
    %32 = tpu.matmul %30, %0, %cst_17 {dimension_numbers = #tpu.dot_dimension_numbers<[1], [0], [0], [1], [0, 0, 1, 1], [], []>} : vector<32x16xbf16>, vector<16x128xbf16>, vector<32x128xf32> -> vector<32x128xf32>
    %33 = arith.addf %31, %32 : vector<32x128xf32>
    %34 = vector.shape_cast %33 : vector<32x128xf32> to vector<2x16x128xf32>
    %35 = vector.extract_strided_slice %34 {offsets = [0, 0, 0], sizes = [2, 14, 128], strides = [1, 1, 1]} : vector<2x16x128xf32> to vector<2x14x128xf32>
    %cst_18 = arith.constant 0.566363692 : f32
    %36 = vector.broadcast %cst_18 : f32 to vector<2x14x128xf32>
    %37 = arith.mulf %36, %35 : vector<2x14x128xf32>
    %38 = vector.extract_strided_slice %34 {offsets = [0, 1, 0], sizes = [2, 14, 128], strides = [1, 1, 1]} : vector<2x16x128xf32> to vector<2x14x128xf32>
    %cst_19 = arith.constant 0.598718822 : f32
    %39 = vector.broadcast %cst_19 : f32 to vector<2x14x128xf32>
    %40 = arith.mulf %39, %38 : vector<2x14x128xf32>
    %41 = arith.addf %37, %40 : vector<2x14x128xf32>
    %42 = vector.extract_strided_slice %34 {offsets = [0, 2, 0], sizes = [2, 14, 128], strides = [1, 1, 1]} : vector<2x16x128xf32> to vector<2x14x128xf32>
    %cst_20 = arith.constant 0.566363692 : f32
    %43 = vector.broadcast %cst_20 : f32 to vector<2x14x128xf32>
    %44 = arith.mulf %43, %42 : vector<2x14x128xf32>
    %45 = arith.addf %41, %44 : vector<2x14x128xf32>
    %c14 = arith.constant 14 : index
    %c0_21 = arith.constant 0 : index
    %c0_22 = arith.constant 0 : index
    %46 = vector.load %arg6[%c14, %c0_21, %c0_22] : memref<16x14x128xf32, #tpu.memory_space<vmem>>, vector<2x14x128xf32>
    tpu.vector_store %arg6[%c14, %c0_21, %c0_22], %45 {strides = array<i32>} : memref<16x14x128xf32, #tpu.memory_space<vmem>>, vector<2x14x128xf32>,
    %c0_23 = arith.constant 0 : index
    %c0_24 = arith.constant 0 : index
    %c0_25 = arith.constant 0 : index
    %47 = vector.load %arg6[%c0_23, %c0_24, %c0_25] : memref<16x14x128xf32, #tpu.memory_space<vmem>>, vector<14x14x128xf32>
    %c1 = arith.constant 1 : index
    %c0_26 = arith.constant 0 : index
    %c0_27 = arith.constant 0 : index
    %48 = vector.load %arg6[%c1, %c0_26, %c0_27] : memref<16x14x128xf32, #tpu.memory_space<vmem>>, vector<14x14x128xf32>
    %49 = arith.addf %47, %48 : vector<14x14x128xf32>
    %c2 = arith.constant 2 : index
    %c0_28 = arith.constant 0 : index
    %c0_29 = arith.constant 0 : index
    %50 = vector.load %arg6[%c2, %c0_28, %c0_29] : memref<16x14x128xf32, #tpu.memory_space<vmem>>, vector<14x14x128xf32>
    %51 = arith.addf %49, %50 : vector<14x14x128xf32>
    %c0_30 = arith.constant 0 : index
    %c0_31 = arith.constant 0 : index
    %c0_32 = arith.constant 0 : index
    %c0_33 = arith.constant 0 : index
    %52 = vector.load %arg5[%c0_30, %c0_31, %c0_32, %c0_33] : memref<1x14x14x128xf32, #tpu.memory_space<vmem>>, vector<1x14x14x128xf32>
    %53 = vector.shape_cast %52 : vector<1x14x14x128xf32> to vector<14x14x128xf32>
    %54 = vector.shape_cast %51 : vector<14x14x128xf32> to vector<1x14x14x128xf32>
    tpu.vector_store %arg5[%c0_30, %c0_31, %c0_32, %c0_33], %54 {strides = array<i32>} : memref<1x14x14x128xf32, #tpu.memory_space<vmem>>, vector<1x14x14x128xf32>,
    return
  }
  func.func @transform_0(%arg0: i32, %arg1: i32) -> (i32, i32) {
    %c0_i32 = arith.constant 0 : i32
    %c0_i32_0 = arith.constant 0 : i32
    %c0_i32_1 = arith.constant 0 : i32
    return %c0_i32, %c0_i32_0 : i32, i32
  }
  func.func @transform_1(%arg0: i32, %arg1: i32) -> (i32, i32, i32, i32) {
    %c0_i32 = arith.constant 0 : i32
    %c0_i32_0 = arith.constant 0 : i32
    %c0_i32_1 = arith.constant 0 : i32
    return %arg0, %arg1, %c0_i32, %c0_i32_0 : i32, i32, i32, i32
  }
  func.func @transform_2(%arg0: i32, %arg1: i32) -> (i32, i32, i32, i32) {
    %c1_i32 = arith.constant 1 : i32
    %0 = arith.addi %arg1, %c1_i32 : i32
    %c7_i32 = arith.constant 7 : i32
    %1 = arith.muli %0, %c7_i32 : i32
    %c0_i32 = arith.constant 0 : i32
    %c0_i32_0 = arith.constant 0 : i32
    %c0_i32_1 = arith.constant 0 : i32
    return %arg0, %1, %c0_i32, %c0_i32_0 : i32, i32, i32, i32
  }
  func.func @transform_3(%arg0: i32, %arg1: i32) -> (i32, i32, i32, i32) {
    %c0_i32 = arith.constant 0 : i32
    %c0_i32_0 = arith.constant 0 : i32
    %c0_i32_1 = arith.constant 0 : i32
    return %arg0, %arg1, %c0_i32, %c0_i32_0 : i32, i32, i32, i32
  }
}

</mosaic_0001>

<llo_original>
// kernel: tpu_custom_call.1
$region0: #{tpu_custom_call.1}
  #allocation0 [shape = 'u32[]', space=smem, size = 0x4, offset = 0x4, fixed_abs, tag = 'smem constant byte address 0x4 - core index']
  #allocation1 [shape = 'u32[144,128]{1,0:T(1,128)}', space=vmem, size = 0x12000, scoped, tag = 'internal scratch']
  #allocation2 [shape = 'f32[16,14,128]{2,1,0:T(8,128)}', space=vmem, size = 0x20000, scoped, tag = 'scratch operand']
  %s0 = inlined_call_operand.hbm [shape: bf16[16,128], index: 0, kind: input, shape index: {}]
  %s1 = inlined_call_operand.hbm [shape: f32[2,16,16,16], index: 1, kind: input, shape index: {}]
  %s2 = inlined_call_operand.hbm [shape: f32[2,16,16,16], index: 2, kind: input, shape index: {}]
  %s3 = inlined_call_operand.vmem [shape: f32[2,14,14,128], index: 3, kind: output, shape index: {}]
  %s4 = sld [smem:[#allocation0]]
  $region57: #{tpu_custom_call.1} parent=0
    _
  %s6 = ssub.s32 1, %s4
  %s7 = scalar_select 0, %s6, %s4
  $region1: #{tpu_custom_call.1} parent=0
    #allocation3 [shape = 'u8[4096]{0}', space=vmem, size = 0x1000, scoped, tag = 'input window, operand 0, single buffered']
    #allocation4 [shape = 's32[2]{0}', space=sflag, size = 0x8, scoped, tag = 'scoped memory for tpu_custom_call.1']
    #allocation5 [shape = 'u8[229376]{0}', space=vmem, size = 0x38000, scoped, tag = 'input window, operand 1']
    #allocation6 [shape = 's32[2]{0}', space=sflag, size = 0x8, scoped, tag = 'scoped memory for tpu_custom_call.1']
    #allocation7 [shape = 'u8[32768]{0}', space=vmem, size = 0x8000, scoped, tag = 'input window, operand 2']
    %8 = vsyncpa [#allocation4], 0
    %9 = vsyncpa [#allocation6], 0
    %s10 = scalar_lea.sflag [#allocation6], 1
    %11 = vsyncpa %s10, 0
    loop: start=0, step=1, limit=4
    $region2: #{tpu_custom_call.1} parent=1 // loop_pre_header
      _
    $region3: #{tpu_custom_call.1} parent=1 // loop_header
      %s13 = sphi 0, %s17
      %p14 = scmp.ge.s32.totalorder %s13, 4
      %s20 = sphi 0, %s32
      %s21 = sphi 0, %s28
      %s22 = sphi 0, %s20
      %s23 = sphi 0, %s21
      %s24 = sphi 0, %s22
      %s25 = sphi 0, %s23
      %s33 = sphi 0, %s33
      %s35 = sphi 0, %s33
      %s36 = sphi 0, %s35
      %s50 = sphi 0, %s36
      %s58 = sphi 0, %s60
      %s61 = sphi 0, %s58
      %s62 = sphi 0, %s61
      %s78 = sphi 0, %s62
      %s90 = sphi 0, %s92
      %s93 = sphi 0, %s90
      %s94 = sphi 0, %s93
      %s110 = sphi 0, %s94
      %s118 = sphi 0, %s120
      %s121 = sphi 0, %s118
      %s122 = sphi 0, %s121
      %s138 = sphi 0, %s122
    $region4: #{tpu_custom_call.1} parent=1 // loop_header_branch
      %16 = sbr.rel (%p14) target = $region8
    $region5: #{tpu_custom_call.1} parent=1 // loop_body
      %s18 = ssub.s32 %s13, 1
      %s19 = ssub.s32 %s13, 2
      %s26 = sadd.s32 1, %s21
      %p27 = scmp.ge.s32.totalorder %s26, 1
      %s28 = scalar_select %p27, 0, %s26
      %s29 = sadd.s32 1, %s20
      %s30 = scalar_select %p27, %s29, %s20
      %p31 = scmp.ge.s32.totalorder %s30, 2
      %s32 = scalar_select %p31, 0, %s30
      %s34 = sadd.s32 %s33, 1
      %p37 = scmp.eq.s32.totalorder %s13, 1
      %p38 = scmp.ne.s32.totalorder %s33, %s35
      %p39 = scmp.eq.s32.totalorder %s13, 0
      %p40 = por %p38, %p39
      %p41 = scmp.ne.s32.totalorder %s33, %s35
      %p42 = scmp.eq.s32.totalorder %s18, 1
      %p43 = por %p41, %p42
      %p44 = scmp.ne.s32.totalorder %s35, %s36
      %p45 = scmp.eq.s32.totalorder %s18, 0
      %p46 = por %p44, %p45
      %p47 = scmp.ne.s32.totalorder %s35, %s36
      %p48 = scmp.eq.s32.totalorder %s19, 1
      %p49 = por %p47, %p48
      %p51 = scmp.ne.s32.totalorder %s36, %s50
      %p52 = scmp.eq.s32.totalorder %s19, 0
      %p53 = por %p51, %p52
      %s54 = ssub.s32 %s20, %s32
      %s55 = ssub.s32 %s21, %s28
      %s56 = sor.u32 %s54, %s55
      %p57 = scmp.eq.s32.totalorder %s56, 0
      %s59 = sadd.s32 %s58, 1
      %s60 = scalar_select %p57, %s58, %s59
      %p63 = pneg %p57
      %p64 = scmp.eq.s32.totalorder %s13, 1
      %p65 = por %p63, %p64
      %p66 = scmp.ne.s32.totalorder %s58, %s61
      %p67 = scmp.eq.s32.totalorder %s13, 0
      %p68 = por %p66, %p67
      %p69 = scmp.ne.s32.totalorder %s58, %s61
      %p70 = scmp.eq.s32.totalorder %s18, 1
      %p71 = por %p69, %p70
      %p72 = scmp.ne.s32.totalorder %s61, %s62
      %p73 = scmp.eq.s32.totalorder %s18, 0
      %p74 = por %p72, %p73
      %p75 = scmp.ne.s32.totalorder %s61, %s62
      %p76 = scmp.eq.s32.totalorder %s19, 1
      %p77 = por %p75, %p76
      %p79 = scmp.ne.s32.totalorder %s62, %s78
      %p80 = scmp.eq.s32.totalorder %s19, 0
      %p81 = por %p79, %p80
      %s82 = sadd.s32 %s21, 1
      %s83 = smul.u32 %s82, 7
      %s84 = sadd.s32 %s28, 1
      %s85 = smul.u32 %s84, 7
      %s86 = ssub.s32 %s20, %s32
      %s87 = ssub.s32 %s83, %s85
      %s88 = sor.u32 %s86, %s87
      %p89 = scmp.eq.s32.totalorder %s88, 0
      %s91 = sadd.s32 %s90, 1
      %s92 = scalar_select %p89, %s90, %s91
      %p95 = pneg %p89
      %p96 = scmp.eq.s32.totalorder %s13, 1
      %p97 = por %p95, %p96
      %p98 = scmp.ne.s32.totalorder %s90, %s93
      %p99 = scmp.eq.s32.totalorder %s13, 0
      %p100 = por %p98, %p99
      %p101 = scmp.ne.s32.totalorder %s90, %s93
      %p102 = scmp.eq.s32.totalorder %s18, 1
      %p103 = por %p101, %p102
      %p104 = scmp.ne.s32.totalorder %s93, %s94
      %p105 = scmp.eq.s32.totalorder %s18, 0
      %p106 = por %p104, %p105
      %p107 = scmp.ne.s32.totalorder %s93, %s94
      %p108 = scmp.eq.s32.totalorder %s19, 1
      %p109 = por %p107, %p108
      %p111 = scmp.ne.s32.totalorder %s94, %s110
      %p112 = scmp.eq.s32.totalorder %s19, 0
      %p113 = por %p111, %p112
      %s114 = ssub.s32 %s20, %s32
      %s115 = ssub.s32 %s21, %s28
      %s116 = sor.u32 %s114, %s115
      %p117 = scmp.eq.s32.totalorder %s116, 0
      %s119 = sadd.s32 %s118, 1
      %s120 = scalar_select %p117, %s118, %s119
      %p123 = pneg %p117
      %p124 = scmp.eq.s32.totalorder %s13, 1
      %p125 = por %p123, %p124
      %p126 = scmp.ne.s32.totalorder %s118, %s121
      %p127 = scmp.eq.s32.totalorder %s13, 0
      %p128 = por %p126, %p127
      %p129 = scmp.ne.s32.totalorder %s118, %s121
      %p130 = scmp.eq.s32.totalorder %s18, 1
      %p131 = por %p129, %p130
      %p132 = scmp.ne.s32.totalorder %s121, %s122
      %p133 = scmp.eq.s32.totalorder %s18, 0
      %p134 = por %p132, %p133
      %p135 = scmp.ne.s32.totalorder %s121, %s122
      %p136 = scmp.eq.s32.totalorder %s19, 1
      %p137 = por %p135, %p136
      %p139 = scmp.ne.s32.totalorder %s122, %s138
      %p140 = scmp.eq.s32.totalorder %s19, 0
      %p141 = por %p139, %p140
      %p142 = scmp.le.s32.totalorder 1, %s13
      %p143 = scmp.lt.s32.totalorder %s13, 3
      %p144 = pnand %p142, %p143
      %p145 = pneg %p144
      // Predicated region
      $region9: #{tpu_custom_call.1} parent=5 // pred_check
        _
      $region10: #{tpu_custom_call.1} parent=5 // pred_check_branch
        %147 = sbr.rel (%p144) target = $region12
      $region11: #{tpu_custom_call.1} parent=5 // pred_region
        %s148 = ssub.s32 %s13, 1
        // Predicated region
        $region13: #{tpu_custom_call.1} parent=11 // pred_check
          %p149 = pneg %p46
        $region14: #{tpu_custom_call.1} parent=11 // pred_check_branch
          %151 = sbr.rel (%p149) target = $region16
        $region15: #{tpu_custom_call.1} parent=11 // pred_region
          %s153 = ssub.s32 128, 128
          %154 = vsyncadd [#allocation4], %s153
          %s155 = sshll.u32 [#allocation3], 4
          %s156 = int_to_ptr.vmem [resolvable:$true] %s155
          %161 = dma.hbm_to_vmem [thread:$0]  %s0, 128, %s156, [#allocation4], 64, 64, 4
        $region16: #{tpu_custom_call.1} parent=11 // pred_fallthru
          _
      $region12: #{tpu_custom_call.1} parent=5 // pred_fallthru
        _
      %p162 = scmp.lt.s32.totalorder %s13, 2
      // Predicated region
      $region17: #{tpu_custom_call.1} parent=5 // pred_check
        %p163 = pneg %p162
      $region18: #{tpu_custom_call.1} parent=5 // pred_check_branch
        %165 = sbr.rel (%p163) target = $region20
      $region19: #{tpu_custom_call.1} parent=5 // pred_region
        // Predicated region
        $region21: #{tpu_custom_call.1} parent=19 // pred_check
          %p166 = pneg %p68
        $region22: #{tpu_custom_call.1} parent=19 // pred_check_branch
          %168 = sbr.rel (%p166) target = $region24
        $region23: #{tpu_custom_call.1} parent=19 // pred_region
          %s169 = sand.u32 %s13, 1
          %s170 = scalar_lea.sflag [#allocation6], %s169
          %s171 = sand.u32 %s58, 1
          %s172 = smul.addr %s171, 224
          %s173 = scalar_lea.vmem [#allocation5], %s172
          %s174 = smul.u32 14, %s21
          %s175 = ssub.s32 16, %s174
          %p176 = scmp.lt.s32.totalorder %s175, 14
          %s177 = scalar_select %p176, %s175, 14
          %s178 = smul.u32 128, %s177
          %s179 = smul.u32 %s178, 2
          %s181 = ssub.s32 3584, %s179
          %182 = vsyncadd %s170, %s181
          %p183 = scmp.ne.s32.totalorder 0, %s179
          %s184 = smul.addr %s174, 2
          %s185 = smul.addr %s20, 32
          %s186 = sadd.s32 %s184, %s185
          %s187 = smul.addr %s186, 128
          %s188 = scalar_lea.hbm %s1, %s187
          %s189 = smul.u32 %s177, 2
          %s190 = smul.u32 8, %s189
          %s191 = sshll.u32 %s173, 4
          %s192 = int_to_ptr.vmem [resolvable:$true] %s191
          %s193 = sshll.u32 %s190, 4
          %197 = dma.hbm_to_vmem [thread:$0]  (%p183), %s188, %s193, %s192, %s170, 128, 128, 8
        $region24: #{tpu_custom_call.1} parent=19 // pred_fallthru
          _
        // Predicated region
        $region25: #{tpu_custom_call.1} parent=19 // pred_check
          %p198 = pneg %p100
        $region26: #{tpu_custom_call.1} parent=19 // pred_check_branch
          %200 = sbr.rel (%p198) target = $region28
        $region27: #{tpu_custom_call.1} parent=19 // pred_region
          %s201 = sand.u32 %s13, 1
          %s202 = scalar_lea.sflag [#allocation6], %s201
          %s203 = sand.u32 %s90, 1
          %s204 = smul.addr %s203, 32
          %s205 = scalar_lea.vmem [#allocation7], %s204
          %s206 = sadd.s32 %s21, 1
          %s207 = smul.u32 %s206, 7
          %s208 = smul.u32 2, %s207
          %s210 = ssub.s32 512, 512
          %211 = vsyncadd %s202, %s210
          %s212 = smul.addr %s208, 2
          %s213 = smul.addr %s20, 32
          %s214 = sadd.s32 %s212, %s213
          %s215 = smul.addr %s214, 128
          %s216 = scalar_lea.hbm %s2, %s215
          %s217 = sshll.u32 %s205, 4
          %s218 = int_to_ptr.vmem [resolvable:$true] %s217
          %223 = dma.hbm_to_vmem [thread:$0]  %s216, 512, %s218, %s202, 128, 128, 8
        $region28: #{tpu_custom_call.1} parent=19 // pred_fallthru
          _
      $region20: #{tpu_custom_call.1} parent=5 // pred_fallthru
        _
      %p224 = scmp.le.s32.totalorder 1, %s13
      %p225 = scmp.lt.s32.totalorder %s13, 3
      %p226 = pnand %p224, %p225
      %p227 = pneg %p226
      // Predicated region
      $region29: #{tpu_custom_call.1} parent=5 // pred_check
        _
      $region30: #{tpu_custom_call.1} parent=5 // pred_check_branch
        %229 = sbr.rel (%p226) target = $region32
      $region31: #{tpu_custom_call.1} parent=5 // pred_region
        %s230 = ssub.s32 %s13, 1
        // Predicated region
        $region33: #{tpu_custom_call.1} parent=31 // pred_check
          %p231 = pneg %p46
        $region34: #{tpu_custom_call.1} parent=31 // pred_check_branch
          %233 = sbr.rel (%p231) target = $region36
        $region35: #{tpu_custom_call.1} parent=31 // pred_region
          %234 = dma.done [#allocation4], 128
        $region36: #{tpu_custom_call.1} parent=31 // pred_fallthru
          _
        %s235 = sand.u32 %s18, 1
        %s236 = scalar_lea.sflag [#allocation6], %s235
        %s237 = sand.u32 %s61, 1
        %s238 = smul.addr %s237, 224
        %s239 = scalar_lea.vmem [#allocation5], %s238
        // Predicated region
        $region37: #{tpu_custom_call.1} parent=31 // pred_check
          %p240 = pneg %p74
        $region38: #{tpu_custom_call.1} parent=31 // pred_check_branch
          %242 = sbr.rel (%p240) target = $region40
        $region39: #{tpu_custom_call.1} parent=31 // pred_region
          %243 = dma.done %s236, 3584
        $region40: #{tpu_custom_call.1} parent=31 // pred_fallthru
          _
        %s244 = sand.u32 %s18, 1
        %s245 = scalar_lea.sflag [#allocation6], %s244
        %s246 = sand.u32 %s93, 1
        %s247 = smul.addr %s246, 32
        %s248 = scalar_lea.vmem [#allocation7], %s247
        // Predicated region
        $region41: #{tpu_custom_call.1} parent=31 // pred_check
          %p249 = pneg %p106
        $region42: #{tpu_custom_call.1} parent=31 // pred_check_branch
          %251 = sbr.rel (%p249) target = $region44
        $region43: #{tpu_custom_call.1} parent=31 // pred_region
          %252 = dma.done %s245, 512
        $region44: #{tpu_custom_call.1} parent=31 // pred_fallthru
          _
        %p253 = pneg %p46
        %p254 = pneg %p43
        %s255 = sand.u32 %s18, 1
        %s256 = scalar_lea.sflag [#allocation6], %s255
        %s257 = sand.u32 %s61, 1
        %s258 = smul.addr %s257, 224
        %s259 = scalar_lea.vmem [#allocation5], %s258
        %p260 = pneg %p74
        %p261 = pneg %p71
        %s262 = sand.u32 %s18, 1
        %s263 = scalar_lea.sflag [#allocation6], %s262
        %s264 = sand.u32 %s93, 1
        %s265 = smul.addr %s264, 32
        %s266 = scalar_lea.vmem [#allocation7], %s265
        %p267 = pneg %p106
        %p268 = pneg %p103
        %p269 = pneg %p134
        %p270 = pneg %p131
        %s271 = smul.u32 14, %s23
        %p272 = scmp.lt.s32.totalorder %s22, 1
        %s273 = scalar_select %p272, %s22, 1
        %p274 = scmp.lt.s32.totalorder %s271, 13
        %s275 = scalar_select %p274, %s271, 13
        %s276 = smul.addr %s275, 2
        %s277 = smul.addr %s273, 28
        %s278 = sadd.s32 %s276, %s277
        %s279 = smul.addr %s278, 8
        %s280 = scalar_lea.vmem %s3, %s279
        %s281 = smul.u32 14, %s23
        %s282 = ssub.s32 16, %s281
        %p283 = scmp.lt.s32.totalorder %s282, 14
        %s284 = scalar_select %p283, %s282, 14
        %s285 = smul.u32 128, %s284
        %s286 = smul.u32 %s285, 2
        %s287 = sadd.s32 %s23, 1
        %s288 = smul.u32 %s287, 7
        %s289 = smul.u32 2, %s288
        %s290 = smul.u32 14, %s23
        %p291 = scmp.lt.s32.totalorder %s22, 1
        %s292 = scalar_select %p291, %s22, 1
        %p293 = scmp.lt.s32.totalorder %s290, 13
        %s294 = scalar_select %p293, %s290, 13
        %s295 = smul.addr %s294, 2
        %s296 = smul.addr %s292, 28
        %s297 = sadd.s32 %s295, %s296
        %s298 = smul.addr %s297, 8
        %s299 = scalar_lea.vmem %s3, %s298
        %s300 = smul.u32 14, %s23
        %v302 = vld [vmem:[#allocation3] sm:$0xf]
        %v303 = vld [vmem:[#allocation3 + $0x4] sm:$0xf]
        %v304 = vld [vmem:[%s239] sm:$0xff]
        %v305 = vld [vmem:[%s239 + $0x8] sm:$0xff]
        %v306 = vld [vmem:[%s239 + $0x10] sm:$0xff]
        %v307 = vld [vmem:[%s239 + $0x18] sm:$0xff]
        %v308 = vld [vmem:[%s239 + $0x20] sm:$0xff]
        %v309 = vld [vmem:[%s239 + $0x28] sm:$0xff]
        %v310 = vld [vmem:[%s239 + $0x30] sm:$0xff]
        %v311 = vld [vmem:[%s239 + $0x38] sm:$0xff]
        %v312 = vld [vmem:[%s239 + $0x40] sm:$0xff]
        %v313 = vld [vmem:[%s239 + $0x48] sm:$0xff]
        %v314 = vld [vmem:[%s239 + $0x50] sm:$0xff]
        %v315 = vld [vmem:[%s239 + $0x58] sm:$0xff]
        %v316 = vld [vmem:[%s239 + $0x60] sm:$0xff]
        %v317 = vld [vmem:[%s239 + $0x68] sm:$0xff]
        %v318 = vld [vmem:[%s239 + $0x70] sm:$0xff]
        %v319 = vld [vmem:[%s239 + $0x78] sm:$0xff]
        %v320 = vld [vmem:[%s239 + $0x80] sm:$0xff]
        %v321 = vld [vmem:[%s239 + $0x88] sm:$0xff]
        %v322 = vld [vmem:[%s239 + $0x90] sm:$0xff]
        %v323 = vld [vmem:[%s239 + $0x98] sm:$0xff]
        %v324 = vld [vmem:[%s239 + $0xa0] sm:$0xff]
        %v325 = vld [vmem:[%s239 + $0xa8] sm:$0xff]
        %v326 = vld [vmem:[%s239 + $0xb0] sm:$0xff]
        %v327 = vld [vmem:[%s239 + $0xb8] sm:$0xff]
        %v328 = vld [vmem:[%s239 + $0xc0] sm:$0xff]
        %v329 = vld [vmem:[%s239 + $0xc8] sm:$0xff]
        %v330 = vld [vmem:[%s239 + $0xd0] sm:$0xff]
        %v331 = vld [vmem:[%s239 + $0xd8] sm:$0xff]
        %v332 = vpack.c.bf16 %v305, %v304
        %v333 = vpack.c.bf16 %v307, %v306
        %v334 = vpack.c.bf16 %v309, %v308
        %v335 = vpack.c.bf16 %v311, %v310
        %v336 = vpack.c.bf16 %v313, %v312
        %v337 = vpack.c.bf16 %v315, %v314
        %v338 = vpack.c.bf16 %v317, %v316
        %v339 = vpack.c.bf16 %v319, %v318
        %v340 = vpack.c.bf16 %v321, %v320
        %v341 = vpack.c.bf16 %v323, %v322
        %v342 = vpack.c.bf16 %v325, %v324
        %v343 = vpack.c.bf16 %v327, %v326
        %v344 = vpack.c.bf16 %v329, %v328
        %v345 = vpack.c.bf16 %v331, %v330
        %v346 = vunpack.c.l.bf16 %v332
        %v347 = vunpack.c.h.bf16 %v332
        %v348 = vunpack.c.l.bf16 %v333
        %v349 = vunpack.c.h.bf16 %v333
        %v350 = vunpack.c.l.bf16 %v334
        %v351 = vunpack.c.h.bf16 %v334
        %v352 = vunpack.c.l.bf16 %v335
        %v353 = vunpack.c.h.bf16 %v335
        %v354 = vunpack.c.l.bf16 %v336
        %v355 = vunpack.c.h.bf16 %v336
        %v356 = vunpack.c.l.bf16 %v337
        %v357 = vunpack.c.h.bf16 %v337
        %v358 = vunpack.c.l.bf16 %v338
        %v359 = vunpack.c.h.bf16 %v338
        %v360 = vunpack.c.l.bf16 %v339
        %v361 = vunpack.c.h.bf16 %v339
        %v362 = vunpack.c.l.bf16 %v340
        %v363 = vunpack.c.h.bf16 %v340
        %v364 = vunpack.c.l.bf16 %v341
        %v365 = vunpack.c.h.bf16 %v341
        %v366 = vunpack.c.l.bf16 %v342
        %v367 = vunpack.c.h.bf16 %v342
        %v368 = vunpack.c.l.bf16 %v343
        %v369 = vunpack.c.h.bf16 %v343
        %v370 = vunpack.c.l.bf16 %v344
        %v371 = vunpack.c.h.bf16 %v344
        %v372 = vunpack.c.l.bf16 %v345
        %v373 = vunpack.c.h.bf16 %v345
        %v374 = vsub.f32 %v304, %v346
        %v375 = vsub.f32 %v305, %v347
        %v376 = vsub.f32 %v306, %v348
        %v377 = vsub.f32 %v307, %v349
        %v378 = vsub.f32 %v308, %v350
        %v379 = vsub.f32 %v309, %v351
        %v380 = vsub.f32 %v310, %v352
        %v381 = vsub.f32 %v311, %v353
        %v382 = vsub.f32 %v312, %v354
        %v383 = vsub.f32 %v313, %v355
        %v384 = vsub.f32 %v314, %v356
        %v385 = vsub.f32 %v315, %v357
        %v386 = vsub.f32 %v316, %v358
        %v387 = vsub.f32 %v317, %v359
        %v388 = vsub.f32 %v318, %v360
        %v389 = vsub.f32 %v319, %v361
        %v390 = vsub.f32 %v320, %v362
        %v391 = vsub.f32 %v321, %v363
        %v392 = vsub.f32 %v322, %v364
        %v393 = vsub.f32 %v323, %v365
        %v394 = vsub.f32 %v324, %v366
        %v395 = vsub.f32 %v325, %v367
        %v396 = vsub.f32 %v326, %v368
        %v397 = vsub.f32 %v327, %v369
        %v398 = vsub.f32 %v328, %v370
        %v399 = vsub.f32 %v329, %v371
        %v400 = vsub.f32 %v330, %v372
        %v401 = vsub.f32 %v331, %v373
        %v402 = vpack.c.bf16 %v375, %v374
        %v403 = vpack.c.bf16 %v377, %v376
        %v404 = vpack.c.bf16 %v379, %v378
        %v405 = vpack.c.bf16 %v381, %v380
        %v406 = vpack.c.bf16 %v383, %v382
        %v407 = vpack.c.bf16 %v385, %v384
        %v408 = vpack.c.bf16 %v387, %v386
        %v409 = vpack.c.bf16 %v389, %v388
        %v410 = vpack.c.bf16 %v391, %v390
        %v411 = vpack.c.bf16 %v393, %v392
        %v412 = vpack.c.bf16 %v395, %v394
        %v413 = vpack.c.bf16 %v397, %v396
        %v414 = vpack.c.bf16 %v399, %v398
        %v415 = vpack.c.bf16 %v401, %v400
        %v418 = vunpack.c.l.b16 %v302
        %v419 = vunpack.c.l.b16 %v303
        %v420 = vpack.c.b16 %v419, %v418
        %vm422 = vcmask 130048
        %v424 = vsel %vm422, %v402, 0
        %v427 = vsel %vm422, %v403, 0
        %v430 = vsel %vm422, %v404, 0
        %v433 = vsel %vm422, %v405, 0
        %v436 = vsel %vm422, %v406, 0
        %v439 = vsel %vm422, %v407, 0
        %v442 = vsel %vm422, %v408, 0
        %v445 = vsel %vm422, %v409, 0
        %v448 = vsel %vm422, %v410, 0
        %v451 = vsel %vm422, %v411, 0
        %v454 = vsel %vm422, %v412, 0
        %v457 = vsel %vm422, %v413, 0
        %v460 = vsel %vm422, %v414, 0
        %v463 = vsel %vm422, %v415, 0
        %465 = vmatprep.subr.bf16.mxu0 0
        %466 = vmatpush1.bf16.msra.mxu0 %v420
        %467 = vmatprep.subr.bf16.mxu0 0
        %468 = vmatpush1.bf16.msra.mxu0 0
        %469 = vmatprep.subr.bf16.mxu0 0
        %470 = vmatpush1.bf16.msra.mxu0 0
        %471 = vmatprep.subr.bf16.mxu0 0
        %472 = vmatpush1.bf16.msra.mxu0 0
        %473 = vmatprep.subr.bf16.mxu0 0
        %474 = vmatpush1.bf16.msra.mxu0 0
        %475 = vmatprep.subr.bf16.mxu0 0
        %476 = vmatpush1.bf16.msra.mxu0 0
        %477 = vmatprep.subr.bf16.mxu0 0
        %478 = vmatpush1.bf16.msra.mxu0 0
        %479 = vmatprep.subr.bf16.mxu0 0
        %480 = vmatpush1.bf16.msra.mxu0 0
        %481 = vmatprep.subr.bf16.mxu0 0
        %482 = vmatpush1.bf16.msra.mxu0 0
        %483 = vmatprep.subr.bf16.mxu0 0
        %484 = vmatpush1.bf16.msra.mxu0 0
        %485 = vmatprep.subr.bf16.mxu0 0
        %486 = vmatpush1.bf16.msra.mxu0 0
        %487 = vmatprep.subr.bf16.mxu0 0
        %488 = vmatpush1.bf16.msra.mxu0 0
        %489 = vmatprep.subr.bf16.mxu0 0
        %490 = vmatpush1.bf16.msra.mxu0 0
        %491 = vmatprep.subr.bf16.mxu0 0
        %492 = vmatpush1.bf16.msra.mxu0 0
        %493 = vmatprep.subr.bf16.mxu0 0
        %494 = vmatpush1.bf16.msra.mxu0 0
        %495 = vmatprep.subr.bf16.mxu0 0
        %496 = vmatpush1.bf16.msra.mxu0 0
        %497 = vmatprep.mubr.bf16.mxu0 0
        %498 = vmatmul.mubr.bf16.gmra.mrb[0].mxu0 %v424
        %v499 = vpop.f32.mrb[0].mxu0
        %v500 = vadd.f32 0.0, %v499
        %v501 = vpop.f32.mrb[0].mxu0
        %v502 = vpop.f32.mrb[0].mxu0
        %v503 = vadd.f32 0.0, %v502
        %v504 = vpop.f32.mrb[0].mxu0
        %505 = vmatprep.mubr.bf16.mxu0 0
        %506 = vmatmul.mubr.bf16.gmra.mrb[0].mxu0 %v427
        %v507 = vpop.f32.mrb[0].mxu0
        %v508 = vadd.f32 0.0, %v507
        %v509 = vpop.f32.mrb[0].mxu0
        %v510 = vpop.f32.mrb[0].mxu0
        %v511 = vadd.f32 0.0, %v510
        %v512 = vpop.f32.mrb[0].mxu0
        %513 = vmatprep.mubr.bf16.mxu0 0
        %514 = vmatmul.mubr.bf16.gmra.mrb[0].mxu0 %v430
        %v515 = vpop.f32.mrb[0].mxu0
        %v516 = vadd.f32 0.0, %v515
        %v517 = vpop.f32.mrb[0].mxu0
        %v518 = vpop.f32.mrb[0].mxu0
        %v519 = vadd.f32 0.0, %v518
        %v520 = vpop.f32.mrb[0].mxu0
        %521 = vmatprep.mubr.bf16.mxu0 0
        %522 = vmatmul.mubr.bf16.gmra.mrb[0].mxu0 %v433
        %v523 = vpop.f32.mrb[0].mxu0
        %v524 = vadd.f32 0.0, %v523
        %v525 = vpop.f32.mrb[0].mxu0
        %v526 = vpop.f32.mrb[0].mxu0
        %v527 = vadd.f32 0.0, %v526
        %v528 = vpop.f32.mrb[0].mxu0
        %529 = vmatprep.mubr.bf16.mxu0 0
        %530 = vmatmul.mubr.bf16.gmra.mrb[0].mxu0 %v436
        %v531 = vpop.f32.mrb[0].mxu0
        %v532 = vadd.f32 0.0, %v531
        %v533 = vpop.f32.mrb[0].mxu0
        %v534 = vpop.f32.mrb[0].mxu0
        %v535 = vadd.f32 0.0, %v534
        %v536 = vpop.f32.mrb[0].mxu0
        %537 = vmatprep.mubr.bf16.mxu0 0
        %538 = vmatmul.mubr.bf16.gmra.mrb[0].mxu0 %v439
        %v539 = vpop.f32.mrb[0].mxu0
        %v540 = vadd.f32 0.0, %v539
        %v541 = vpop.f32.mrb[0].mxu0
        %v542 = vpop.f32.mrb[0].mxu0
        %v543 = vadd.f32 0.0, %v542
        %v544 = vpop.f32.mrb[0].mxu0
        %545 = vmatprep.mubr.bf16.mxu0 0
        %546 = vmatmul.mubr.bf16.gmra.mrb[0].mxu0 %v442
        %v547 = vpop.f32.mrb[0].mxu0
        %v548 = vadd.f32 0.0, %v547
        %v549 = vpop.f32.mrb[0].mxu0
        %v550 = vpop.f32.mrb[0].mxu0
        %v551 = vadd.f32 0.0, %v550
        %v552 = vpop.f32.mrb[0].mxu0
        %553 = vmatprep.mubr.bf16.mxu0 0
        %554 = vmatmul.mubr.bf16.gmra.mrb[0].mxu0 %v445
        %v555 = vpop.f32.mrb[0].mxu0
        %v556 = vadd.f32 0.0, %v555
        %v557 = vpop.f32.mrb[0].mxu0
        %v558 = vpop.f32.mrb[0].mxu0
        %v559 = vadd.f32 0.0, %v558
        %v560 = vpop.f32.mrb[0].mxu0
        %561 = vmatprep.mubr.bf16.mxu0 0
        %562 = vmatmul.mubr.bf16.gmra.mrb[0].mxu0 %v448
        %v563 = vpop.f32.mrb[0].mxu0
        %v564 = vadd.f32 0.0, %v563
        %v565 = vpop.f32.mrb[0].mxu0
        %v566 = vpop.f32.mrb[0].mxu0
        %v567 = vadd.f32 0.0, %v566
        %v568 = vpop.f32.mrb[0].mxu0
        %569 = vmatprep.mubr.bf16.mxu0 0
        %570 = vmatmul.mubr.bf16.gmra.mrb[0].mxu0 %v451
        %v571 = vpop.f32.mrb[0].mxu0
        %v572 = vadd.f32 0.0, %v571
        %v573 = vpop.f32.mrb[0].mxu0
        %v574 = vpop.f32.mrb[0].mxu0
        %v575 = vadd.f32 0.0, %v574
        %v576 = vpop.f32.mrb[0].mxu0
        %577 = vmatprep.mubr.bf16.mxu0 0
        %578 = vmatmul.mubr.bf16.gmra.mrb[0].mxu0 %v454
        %v579 = vpop.f32.mrb[0].mxu0
        %v580 = vadd.f32 0.0, %v579
        %v581 = vpop.f32.mrb[0].mxu0
        %v582 = vpop.f32.mrb[0].mxu0
        %v583 = vadd.f32 0.0, %v582
        %v584 = vpop.f32.mrb[0].mxu0
        %585 = vmatprep.mubr.bf16.mxu0 0
        %586 = vmatmul.mubr.bf16.gmra.mrb[0].mxu0 %v457
        %v587 = vpop.f32.mrb[0].mxu0
        %v588 = vadd.f32 0.0, %v587
        %v589 = vpop.f32.mrb[0].mxu0
        %v590 = vpop.f32.mrb[0].mxu0
        %v591 = vadd.f32 0.0, %v590
        %v592 = vpop.f32.mrb[0].mxu0
        %593 = vmatprep.mubr.bf16.mxu0 0
        %594 = vmatmul.mubr.bf16.gmra.mrb[0].mxu0 %v460
        %v595 = vpop.f32.mrb[0].mxu0
        %v596 = vadd.f32 0.0, %v595
        %v597 = vpop.f32.mrb[0].mxu0
        %v598 = vpop.f32.mrb[0].mxu0
        %v599 = vadd.f32 0.0, %v598
        %v600 = vpop.f32.mrb[0].mxu0
        %601 = vmatprep.mubr.bf16.mxu0 0
        %602 = vmatmul.mubr.bf16.gmra.mrb[0].mxu0 %v463
        %v603 = vpop.f32.mrb[0].mxu0
        %v604 = vadd.f32 0.0, %v603
        %v605 = vpop.f32.mrb[0].mxu0
        %v606 = vpop.f32.mrb[0].mxu0
        %v607 = vadd.f32 0.0, %v606
        %v608 = vpop.f32.mrb[0].mxu0
        %609 = vdwg.mxu0
        %v611 = vsel %vm422, %v332, 0
        %v614 = vsel %vm422, %v333, 0
        %v617 = vsel %vm422, %v334, 0
        %v620 = vsel %vm422, %v335, 0
        %v623 = vsel %vm422, %v336, 0
        %v626 = vsel %vm422, %v337, 0
        %v629 = vsel %vm422, %v338, 0
        %v632 = vsel %vm422, %v339, 0
        %v635 = vsel %vm422, %v340, 0
        %v638 = vsel %vm422, %v341, 0
        %v641 = vsel %vm422, %v342, 0
        %v644 = vsel %vm422, %v343, 0
        %v647 = vsel %vm422, %v344, 0
        %v650 = vsel %vm422, %v345, 0
        %652 = vmatprep.subr.bf16.mxu0 0
        %653 = vmatpush1.bf16.msra.mxu0 %v420
        %654 = vmatprep.subr.bf16.mxu0 0
        %655 = vmatpush1.bf16.msra.mxu0 0
        %656 = vmatprep.subr.bf16.mxu0 0
        %657 = vmatpush1.bf16.msra.mxu0 0
        %658 = vmatprep.subr.bf16.mxu0 0
        %659 = vmatpush1.bf16.msra.mxu0 0
        %660 = vmatprep.subr.bf16.mxu0 0
        %661 = vmatpush1.bf16.msra.mxu0 0
        %662 = vmatprep.subr.bf16.mxu0 0
        %663 = vmatpush1.bf16.msra.mxu0 0
        %664 = vmatprep.subr.bf16.mxu0 0
        %665 = vmatpush1.bf16.msra.mxu0 0
        %666 = vmatprep.subr.bf16.mxu0 0
        %667 = vmatpush1.bf16.msra.mxu0 0
        %668 = vmatprep.subr.bf16.mxu0 0
        %669 = vmatpush1.bf16.msra.mxu0 0
        %670 = vmatprep.subr.bf16.mxu0 0
        %671 = vmatpush1.bf16.msra.mxu0 0
        %672 = vmatprep.subr.bf16.mxu0 0
        %673 = vmatpush1.bf16.msra.mxu0 0
        %674 = vmatprep.subr.bf16.mxu0 0
        %675 = vmatpush1.bf16.msra.mxu0 0
        %676 = vmatprep.subr.bf16.mxu0 0
        %677 = vmatpush1.bf16.msra.mxu0 0
        %678 = vmatprep.subr.bf16.mxu0 0
        %679 = vmatpush1.bf16.msra.mxu0 0
        %680 = vmatprep.subr.bf16.mxu0 0
        %681 = vmatpush1.bf16.msra.mxu0 0
        %682 = vmatprep.subr.bf16.mxu0 0
        %683 = vmatpush1.bf16.msra.mxu0 0
        %684 = vmatprep.mubr.bf16.mxu0 0
        %685 = vmatmul.mubr.bf16.gmra.mrb[0].mxu0 %v611
        %v686 = vpop.f32.mrb[0].mxu0
        %v687 = vadd.f32 %v500, %v686
        %v688 = vpop.f32.mrb[0].mxu0
        %v689 = vpop.f32.mrb[0].mxu0
        %v690 = vadd.f32 %v503, %v689
        %v691 = vpop.f32.mrb[0].mxu0
        %692 = vmatprep.mubr.bf16.mxu0 0
        %693 = vmatmul.mubr.bf16.gmra.mrb[0].mxu0 %v614
        %v694 = vpop.f32.mrb[0].mxu0
        %v695 = vadd.f32 %v508, %v694
        %v696 = vpop.f32.mrb[0].mxu0
        %v697 = vpop.f32.mrb[0].mxu0
        %v698 = vadd.f32 %v511, %v697
        %v699 = vpop.f32.mrb[0].mxu0
        %700 = vmatprep.mubr.bf16.mxu0 0
        %701 = vmatmul.mubr.bf16.gmra.mrb[0].mxu0 %v617
        %v702 = vpop.f32.mrb[0].mxu0
        %v703 = vadd.f32 %v516, %v702
        %v704 = vpop.f32.mrb[0].mxu0
        %v705 = vpop.f32.mrb[0].mxu0
        %v706 = vadd.f32 %v519, %v705
        %v707 = vpop.f32.mrb[0].mxu0
        %708 = vmatprep.mubr.bf16.mxu0 0
        %709 = vmatmul.mubr.bf16.gmra.mrb[0].mxu0 %v620
        %v710 = vpop.f32.mrb[0].mxu0
        %v711 = vadd.f32 %v524, %v710
        %v712 = vpop.f32.mrb[0].mxu0
        %v713 = vpop.f32.mrb[0].mxu0
        %v714 = vadd.f32 %v527, %v713
        %v715 = vpop.f32.mrb[0].mxu0
        %716 = vmatprep.mubr.bf16.mxu0 0
        %717 = vmatmul.mubr.bf16.gmra.mrb[0].mxu0 %v623
        %v718 = vpop.f32.mrb[0].mxu0
        %v719 = vadd.f32 %v532, %v718
        %v720 = vpop.f32.mrb[0].mxu0
        %v721 = vpop.f32.mrb[0].mxu0
        %v722 = vadd.f32 %v535, %v721
        %v723 = vpop.f32.mrb[0].mxu0
        %724 = vmatprep.mubr.bf16.mxu0 0
        %725 = vmatmul.mubr.bf16.gmra.mrb[0].mxu0 %v626
        %v726 = vpop.f32.mrb[0].mxu0
        %v727 = vadd.f32 %v540, %v726
        %v728 = vpop.f32.mrb[0].mxu0
        %v729 = vpop.f32.mrb[0].mxu0
        %v730 = vadd.f32 %v543, %v729
        %v731 = vpop.f32.mrb[0].mxu0
        %732 = vmatprep.mubr.bf16.mxu0 0
        %733 = vmatmul.mubr.bf16.gmra.mrb[0].mxu0 %v629
        %v734 = vpop.f32.mrb[0].mxu0
        %v735 = vadd.f32 %v548, %v734
        %v736 = vpop.f32.mrb[0].mxu0
        %v737 = vpop.f32.mrb[0].mxu0
        %v738 = vadd.f32 %v551, %v737
        %v739 = vpop.f32.mrb[0].mxu0
        %740 = vmatprep.mubr.bf16.mxu0 0
        %741 = vmatmul.mubr.bf16.gmra.mrb[0].mxu0 %v632
        %v742 = vpop.f32.mrb[0].mxu0
        %v743 = vadd.f32 %v556, %v742
        %v744 = vpop.f32.mrb[0].mxu0
        %v745 = vpop.f32.mrb[0].mxu0
        %v746 = vadd.f32 %v559, %v745
        %v747 = vpop.f32.mrb[0].mxu0
        %748 = vmatprep.mubr.bf16.mxu0 0
        %749 = vmatmul.mubr.bf16.gmra.mrb[0].mxu0 %v635
        %v750 = vpop.f32.mrb[0].mxu0
        %v751 = vadd.f32 %v564, %v750
        %v752 = vpop.f32.mrb[0].mxu0
        %v753 = vpop.f32.mrb[0].mxu0
        %v754 = vadd.f32 %v567, %v753
        %v755 = vpop.f32.mrb[0].mxu0
        %756 = vmatprep.mubr.bf16.mxu0 0
        %757 = vmatmul.mubr.bf16.gmra.mrb[0].mxu0 %v638
        %v758 = vpop.f32.mrb[0].mxu0
        %v759 = vadd.f32 %v572, %v758
        %v760 = vpop.f32.mrb[0].mxu0
        %v761 = vpop.f32.mrb[0].mxu0
        %v762 = vadd.f32 %v575, %v761
        %v763 = vpop.f32.mrb[0].mxu0
        %764 = vmatprep.mubr.bf16.mxu0 0
        %765 = vmatmul.mubr.bf16.gmra.mrb[0].mxu0 %v641
        %v766 = vpop.f32.mrb[0].mxu0
        %v767 = vadd.f32 %v580, %v766
        %v768 = vpop.f32.mrb[0].mxu0
        %v769 = vpop.f32.mrb[0].mxu0
        %v770 = vadd.f32 %v583, %v769
        %v771 = vpop.f32.mrb[0].mxu0
        %772 = vmatprep.mubr.bf16.mxu0 0
        %773 = vmatmul.mubr.bf16.gmra.mrb[0].mxu0 %v644
        %v774 = vpop.f32.mrb[0].mxu0
        %v775 = vadd.f32 %v588, %v774
        %v776 = vpop.f32.mrb[0].mxu0
        %v777 = vpop.f32.mrb[0].mxu0
        %v778 = vadd.f32 %v591, %v777
        %v779 = vpop.f32.mrb[0].mxu0
        %780 = vmatprep.mubr.bf16.mxu0 0
        %781 = vmatmul.mubr.bf16.gmra.mrb[0].mxu0 %v647
        %v782 = vpop.f32.mrb[0].mxu0
        %v783 = vadd.f32 %v596, %v782
        %v784 = vpop.f32.mrb[0].mxu0
        %v785 = vpop.f32.mrb[0].mxu0
        %v786 = vadd.f32 %v599, %v785
        %v787 = vpop.f32.mrb[0].mxu0
        %788 = vmatprep.mubr.bf16.mxu0 0
        %789 = vmatmul.mubr.bf16.gmra.mrb[0].mxu0 %v650
        %v790 = vpop.f32.mrb[0].mxu0
        %v791 = vadd.f32 %v604, %v790
        %v792 = vpop.f32.mrb[0].mxu0
        %v793 = vpop.f32.mrb[0].mxu0
        %v794 = vadd.f32 %v607, %v793
        %v795 = vpop.f32.mrb[0].mxu0
        %796 = vdwg.mxu0
        %v797 = vmul.f32 %v687, 0.5663637
        %v798 = vmul.f32 %v690, 0.5663637
        %v799 = vmul.f32 %v695, 0.5663637
        %v800 = vmul.f32 %v698, 0.5663637
        %v801 = vmul.f32 %v703, 0.5663637
        %v802 = vmul.f32 %v706, 0.5663637
        %v803 = vmul.f32 %v711, 0.5663637
        %v804 = vmul.f32 %v714, 0.5663637
        %v805 = vmul.f32 %v719, 0.5663637
        %v806 = vmul.f32 %v722, 0.5663637
        %v807 = vmul.f32 %v727, 0.5663637
        %v808 = vmul.f32 %v730, 0.5663637
        %v809 = vmul.f32 %v735, 0.5663637
        %v810 = vmul.f32 %v738, 0.5663637
        %v811 = vmul.f32 %v743, 0.5663637
        %v812 = vmul.f32 %v746, 0.5663637
        %v813 = vmul.f32 %v751, 0.5663637
        %v814 = vmul.f32 %v754, 0.5663637
        %v815 = vmul.f32 %v759, 0.5663637
        %v816 = vmul.f32 %v762, 0.5663637
        %v817 = vmul.f32 %v767, 0.5663637
        %v818 = vmul.f32 %v770, 0.5663637
        %v819 = vmul.f32 %v775, 0.5663637
        %v820 = vmul.f32 %v778, 0.5663637
        %v821 = vmul.f32 %v783, 0.5663637
        %v822 = vmul.f32 %v786, 0.5663637
        %v823 = vmul.f32 %v791, 0.5663637
        %v824 = vmul.f32 %v794, 0.5663637
        %v825 = vmul.f32 %v687, 0.5987188
        %v826 = vmul.f32 %v690, 0.5987188
        %v827 = vmul.f32 %v695, 0.5987188
        %v828 = vmul.f32 %v698, 0.5987188
        %v829 = vmul.f32 %v703, 0.5987188
        %v830 = vmul.f32 %v706, 0.5987188
        %v831 = vmul.f32 %v711, 0.5987188
        %v832 = vmul.f32 %v714, 0.5987188
        %v833 = vmul.f32 %v719, 0.5987188
        %v834 = vmul.f32 %v722, 0.5987188
        %v835 = vmul.f32 %v727, 0.5987188
        %v836 = vmul.f32 %v730, 0.5987188
        %v837 = vmul.f32 %v735, 0.5987188
        %v838 = vmul.f32 %v738, 0.5987188
        %v839 = vmul.f32 %v743, 0.5987188
        %v840 = vmul.f32 %v746, 0.5987188
        %v841 = vmul.f32 %v751, 0.5987188
        %v842 = vmul.f32 %v754, 0.5987188
        %v843 = vmul.f32 %v759, 0.5987188
        %v844 = vmul.f32 %v762, 0.5987188
        %v845 = vmul.f32 %v767, 0.5987188
        %v846 = vmul.f32 %v770, 0.5987188
        %v847 = vmul.f32 %v775, 0.5987188
        %v848 = vmul.f32 %v778, 0.5987188
        %v849 = vmul.f32 %v783, 0.5987188
        %v850 = vmul.f32 %v786, 0.5987188
        %v851 = vmul.f32 %v791, 0.5987188
        %v852 = vmul.f32 %v794, 0.5987188
        %vm881 = vcmask 1046528
        %v882 = vrot.slane %v825, 1
        %v883 = vrot.slane %v826, 1
        %v884 = vsel %vm881, %v882, %v883
        %v885 = vrot.slane %v827, 1
        %v886 = vrot.slane %v828, 1
        %v887 = vsel %vm881, %v885, %v886
        %v888 = vrot.slane %v829, 1
        %v889 = vrot.slane %v830, 1
        %v890 = vsel %vm881, %v888, %v889
        %v891 = vrot.slane %v831, 1
        %v892 = vrot.slane %v832, 1
        %v893 = vsel %vm881, %v891, %v892
        %v894 = vrot.slane %v833, 1
        %v895 = vrot.slane %v834, 1
        %v896 = vsel %vm881, %v894, %v895
        %v897 = vrot.slane %v835, 1
        %v898 = vrot.slane %v836, 1
        %v899 = vsel %vm881, %v897, %v898
        %v900 = vrot.slane %v837, 1
        %v901 = vrot.slane %v838, 1
        %v902 = vsel %vm881, %v900, %v901
        %v903 = vrot.slane %v839, 1
        %v904 = vrot.slane %v840, 1
        %v905 = vsel %vm881, %v903, %v904
        %v906 = vrot.slane %v841, 1
        %v907 = vrot.slane %v842, 1
        %v908 = vsel %vm881, %v906, %v907
        %v909 = vrot.slane %v843, 1
        %v910 = vrot.slane %v844, 1
        %v911 = vsel %vm881, %v909, %v910
        %v912 = vrot.slane %v845, 1
        %v913 = vrot.slane %v846, 1
        %v914 = vsel %vm881, %v912, %v913
        %v915 = vrot.slane %v847, 1
        %v916 = vrot.slane %v848, 1
        %v917 = vsel %vm881, %v915, %v916
        %v918 = vrot.slane %v849, 1
        %v919 = vrot.slane %v850, 1
        %v920 = vsel %vm881, %v918, %v919
        %v921 = vrot.slane %v851, 1
        %v922 = vrot.slane %v852, 1
        %v923 = vsel %vm881, %v921, %v922
        %v952 = vadd.f32 %v797, %v884
        %v953 = vadd.f32 %v798, %v883
        %v954 = vadd.f32 %v799, %v887
        %v955 = vadd.f32 %v800, %v886
        %v956 = vadd.f32 %v801, %v890
        %v957 = vadd.f32 %v802, %v889
        %v958 = vadd.f32 %v803, %v893
        %v959 = vadd.f32 %v804, %v892
        %v960 = vadd.f32 %v805, %v896
        %v961 = vadd.f32 %v806, %v895
        %v962 = vadd.f32 %v807, %v899
        %v963 = vadd.f32 %v808, %v898
        %v964 = vadd.f32 %v809, %v902
        %v965 = vadd.f32 %v810, %v901
        %v966 = vadd.f32 %v811, %v905
        %v967 = vadd.f32 %v812, %v904
        %v968 = vadd.f32 %v813, %v908
        %v969 = vadd.f32 %v814, %v907
        %v970 = vadd.f32 %v815, %v911
        %v971 = vadd.f32 %v816, %v910
        %v972 = vadd.f32 %v817, %v914
        %v973 = vadd.f32 %v818, %v913
        %v974 = vadd.f32 %v819, %v917
        %v975 = vadd.f32 %v820, %v916
        %v976 = vadd.f32 %v821, %v920
        %v977 = vadd.f32 %v822, %v919
        %v978 = vadd.f32 %v823, %v923
        %v979 = vadd.f32 %v824, %v922
        %vm1008 = vcmask 1045504
        %v1009 = vrot.slane %v797, 2
        %v1010 = vrot.slane %v798, 2
        %v1011 = vsel %vm1008, %v1009, %v1010
        %v1012 = vrot.slane %v799, 2
        %v1013 = vrot.slane %v800, 2
        %v1014 = vsel %vm1008, %v1012, %v1013
        %v1015 = vrot.slane %v801, 2
        %v1016 = vrot.slane %v802, 2
        %v1017 = vsel %vm1008, %v1015, %v1016
        %v1018 = vrot.slane %v803, 2
        %v1019 = vrot.slane %v804, 2
        %v1020 = vsel %vm1008, %v1018, %v1019
        %v1021 = vrot.slane %v805, 2
        %v1022 = vrot.slane %v806, 2
        %v1023 = vsel %vm1008, %v1021, %v1022
        %v1024 = vrot.slane %v807, 2
        %v1025 = vrot.slane %v808, 2
        %v1026 = vsel %vm1008, %v1024, %v1025
        %v1027 = vrot.slane %v809, 2
        %v1028 = vrot.slane %v810, 2
        %v1029 = vsel %vm1008, %v1027, %v1028
        %v1030 = vrot.slane %v811, 2
        %v1031 = vrot.slane %v812, 2
        %v1032 = vsel %vm1008, %v1030, %v1031
        %v1033 = vrot.slane %v813, 2
        %v1034 = vrot.slane %v814, 2
        %v1035 = vsel %vm1008, %v1033, %v1034
        %v1036 = vrot.slane %v815, 2
        %v1037 = vrot.slane %v816, 2
        %v1038 = vsel %vm1008, %v1036, %v1037
        %v1039 = vrot.slane %v817, 2
        %v1040 = vrot.slane %v818, 2
        %v1041 = vsel %vm1008, %v1039, %v1040
        %v1042 = vrot.slane %v819, 2
        %v1043 = vrot.slane %v820, 2
        %v1044 = vsel %vm1008, %v1042, %v1043
        %v1045 = vrot.slane %v821, 2
        %v1046 = vrot.slane %v822, 2
        %v1047 = vsel %vm1008, %v1045, %v1046
        %v1048 = vrot.slane %v823, 2
        %v1049 = vrot.slane %v824, 2
        %v1050 = vsel %vm1008, %v1048, %v1049
        %v1079 = vadd.f32 %v952, %v1011
        %v1080 = vadd.f32 %v953, %v1010
        %v1081 = vadd.f32 %v954, %v1014
        %v1082 = vadd.f32 %v955, %v1013
        %v1083 = vadd.f32 %v956, %v1017
        %v1084 = vadd.f32 %v957, %v1016
        %v1085 = vadd.f32 %v958, %v1020
        %v1086 = vadd.f32 %v959, %v1019
        %v1087 = vadd.f32 %v960, %v1023
        %v1088 = vadd.f32 %v961, %v1022
        %v1089 = vadd.f32 %v962, %v1026
        %v1090 = vadd.f32 %v963, %v1025
        %v1091 = vadd.f32 %v964, %v1029
        %v1092 = vadd.f32 %v965, %v1028
        %v1093 = vadd.f32 %v966, %v1032
        %v1094 = vadd.f32 %v967, %v1031
        %v1095 = vadd.f32 %v968, %v1035
        %v1096 = vadd.f32 %v969, %v1034
        %v1097 = vadd.f32 %v970, %v1038
        %v1098 = vadd.f32 %v971, %v1037
        %v1099 = vadd.f32 %v972, %v1041
        %v1100 = vadd.f32 %v973, %v1040
        %v1101 = vadd.f32 %v974, %v1044
        %v1102 = vadd.f32 %v975, %v1043
        %v1103 = vadd.f32 %v976, %v1047
        %v1104 = vadd.f32 %v977, %v1046
        %v1105 = vadd.f32 %v978, %v1050
        %v1106 = vadd.f32 %v979, %v1049
        %1107 = vst [vmem:[#allocation2] sm:$0xff] %v1079
        %1108 = vst [vmem:[#allocation2 + $0x8] sm:$0x3f] %v1080
        %1109 = vst [vmem:[#allocation2 + $0x10] sm:$0xff] %v1081
        %1110 = vst [vmem:[#allocation2 + $0x18] sm:$0x3f] %v1082
        %1111 = vst [vmem:[#allocation2 + $0x20] sm:$0xff] %v1083
        %1112 = vst [vmem:[#allocation2 + $0x28] sm:$0x3f] %v1084
        %1113 = vst [vmem:[#allocation2 + $0x30] sm:$0xff] %v1085
        %1114 = vst [vmem:[#allocation2 + $0x38] sm:$0x3f] %v1086
        %1115 = vst [vmem:[#allocation2 + $0x40] sm:$0xff] %v1087
        %1116 = vst [vmem:[#allocation2 + $0x48] sm:$0x3f] %v1088
        %1117 = vst [vmem:[#allocation2 + $0x50] sm:$0xff] %v1089
        %1118 = vst [vmem:[#allocation2 + $0x58] sm:$0x3f] %v1090
        %1119 = vst [vmem:[#allocation2 + $0x60] sm:$0xff] %v1091
        %1120 = vst [vmem:[#allocation2 + $0x68] sm:$0x3f] %v1092
        %1121 = vst [vmem:[#allocation2 + $0x70] sm:$0xff] %v1093
        %1122 = vst [vmem:[#allocation2 + $0x78] sm:$0x3f] %v1094
        %1123 = vst [vmem:[#allocation2 + $0x80] sm:$0xff] %v1095
        %1124 = vst [vmem:[#allocation2 + $0x88] sm:$0x3f] %v1096
        %1125 = vst [vmem:[#allocation2 + $0x90] sm:$0xff] %v1097
        %1126 = vst [vmem:[#allocation2 + $0x98] sm:$0x3f] %v1098
        %1127 = vst [vmem:[#allocation2 + $0xa0] sm:$0xff] %v1099
        %1128 = vst [vmem:[#allocation2 + $0xa8] sm:$0x3f] %v1100
        %1129 = vst [vmem:[#allocation2 + $0xb0] sm:$0xff] %v1101
        %1130 = vst [vmem:[#allocation2 + $0xb8] sm:$0x3f] %v1102
        %1131 = vst [vmem:[#allocation2 + $0xc0] sm:$0xff] %v1103
        %1132 = vst [vmem:[#allocation2 + $0xc8] sm:$0x3f] %v1104
        %1133 = vst [vmem:[#allocation2 + $0xd0] sm:$0xff] %v1105
        %1134 = vst [vmem:[#allocation2 + $0xd8] sm:$0x3f] %v1106
        %v1135 = vld [vmem:[%s248] sm:$0xff]
        %v1136 = vld [vmem:[%s248 + $0x8] sm:$0xff]
        %v1137 = vld [vmem:[%s248 + $0x10] sm:$0xff]
        %v1138 = vld [vmem:[%s248 + $0x18] sm:$0xff]
        %v1139 = vpack.c.bf16 %v1136, %v1135
        %v1140 = vpack.c.bf16 %v1138, %v1137
        %v1141 = vunpack.c.l.bf16 %v1139
        %v1142 = vunpack.c.h.bf16 %v1139
        %v1143 = vunpack.c.l.bf16 %v1140
        %v1144 = vunpack.c.h.bf16 %v1140
        %v1145 = vsub.f32 %v1135, %v1141
        %v1146 = vsub.f32 %v1136, %v1142
        %v1147 = vsub.f32 %v1137, %v1143
        %v1148 = vsub.f32 %v1138, %v1144
        %v1149 = vpack.c.bf16 %v1146, %v1145
        %v1150 = vpack.c.bf16 %v1148, %v1147
        %v1152 = vsel %vm422, %v1149, 0
        %v1155 = vsel %vm422, %v1150, 0
        %1157 = vmatprep.subr.bf16.mxu0 0
        %1158 = vmatpush1.bf16.msra.mxu0 %v420
        %1159 = vmatprep.subr.bf16.mxu0 0
        %1160 = vmatpush1.bf16.msra.mxu0 0
        %1161 = vmatprep.subr.bf16.mxu0 0
        %1162 = vmatpush1.bf16.msra.mxu0 0
        %1163 = vmatprep.subr.bf16.mxu0 0
        %1164 = vmatpush1.bf16.msra.mxu0 0
        %1165 = vmatprep.subr.bf16.mxu0 0
        %1166 = vmatpush1.bf16.msra.mxu0 0
        %1167 = vmatprep.subr.bf16.mxu0 0
        %1168 = vmatpush1.bf16.msra.mxu0 0
        %1169 = vmatprep.subr.bf16.mxu0 0
        %1170 = vmatpush1.bf16.msra.mxu0 0
        %1171 = vmatprep.subr.bf16.mxu0 0
        %1172 = vmatpush1.bf16.msra.mxu0 0
        %1173 = vmatprep.subr.bf16.mxu0 0
        %1174 = vmatpush1.bf16.msra.mxu0 0
        %1175 = vmatprep.subr.bf16.mxu0 0
        %1176 = vmatpush1.bf16.msra.mxu0 0
        %1177 = vmatprep.subr.bf16.mxu0 0
        %1178 = vmatpush1.bf16.msra.mxu0 0
        %1179 = vmatprep.subr.bf16.mxu0 0
        %1180 = vmatpush1.bf16.msra.mxu0 0
        %1181 = vmatprep.subr.bf16.mxu0 0
        %1182 = vmatpush1.bf16.msra.mxu0 0
        %1183 = vmatprep.subr.bf16.mxu0 0
        %1184 = vmatpush1.bf16.msra.mxu0 0
        %1185 = vmatprep.subr.bf16.mxu0 0
        %1186 = vmatpush1.bf16.msra.mxu0 0
        %1187 = vmatprep.subr.bf16.mxu0 0
        %1188 = vmatpush1.bf16.msra.mxu0 0
        %1189 = vmatprep.mubr.bf16.mxu0 0
        %1190 = vmatmul.mubr.bf16.gmra.mrb[0].mxu0 %v1152
        %v1191 = vpop.f32.mrb[0].mxu0
        %v1192 = vadd.f32 0.0, %v1191
        %v1193 = vpop.f32.mrb[0].mxu0
        %v1194 = vpop.f32.mrb[0].mxu0
        %v1195 = vadd.f32 0.0, %v1194
        %v1196 = vpop.f32.mrb[0].mxu0
        %1197 = vmatprep.mubr.bf16.mxu0 0
        %1198 = vmatmul.mubr.bf16.gmra.mrb[0].mxu0 %v1155
        %v1199 = vpop.f32.mrb[0].mxu0
        %v1200 = vadd.f32 0.0, %v1199
        %v1201 = vpop.f32.mrb[0].mxu0
        %v1202 = vpop.f32.mrb[0].mxu0
        %v1203 = vadd.f32 0.0, %v1202
        %v1204 = vpop.f32.mrb[0].mxu0
        %1205 = vdwg.mxu0
        %v1207 = vsel %vm422, %v1139, 0
        %v1210 = vsel %vm422, %v1140, 0
        %1212 = vmatprep.subr.bf16.mxu0 0
        %1213 = vmatpush1.bf16.msra.mxu0 %v420
        %1214 = vmatprep.subr.bf16.mxu0 0
        %1215 = vmatpush1.bf16.msra.mxu0 0
        %1216 = vmatprep.subr.bf16.mxu0 0
        %1217 = vmatpush1.bf16.msra.mxu0 0
        %1218 = vmatprep.subr.bf16.mxu0 0
        %1219 = vmatpush1.bf16.msra.mxu0 0
        %1220 = vmatprep.subr.bf16.mxu0 0
        %1221 = vmatpush1.bf16.msra.mxu0 0
        %1222 = vmatprep.subr.bf16.mxu0 0
        %1223 = vmatpush1.bf16.msra.mxu0 0
        %1224 = vmatprep.subr.bf16.mxu0 0
        %1225 = vmatpush1.bf16.msra.mxu0 0
        %1226 = vmatprep.subr.bf16.mxu0 0
        %1227 = vmatpush1.bf16.msra.mxu0 0
        %1228 = vmatprep.subr.bf16.mxu0 0
        %1229 = vmatpush1.bf16.msra.mxu0 0
        %1230 = vmatprep.subr.bf16.mxu0 0
        %1231 = vmatpush1.bf16.msra.mxu0 0
        %1232 = vmatprep.subr.bf16.mxu0 0
        %1233 = vmatpush1.bf16.msra.mxu0 0
        %1234 = vmatprep.subr.bf16.mxu0 0
        %1235 = vmatpush1.bf16.msra.mxu0 0
        %1236 = vmatprep.subr.bf16.mxu0 0
        %1237 = vmatpush1.bf16.msra.mxu0 0
        %1238 = vmatprep.subr.bf16.mxu0 0
        %1239 = vmatpush1.bf16.msra.mxu0 0
        %1240 = vmatprep.subr.bf16.mxu0 0
        %1241 = vmatpush1.bf16.msra.mxu0 0
        %1242 = vmatprep.subr.bf16.mxu0 0
        %1243 = vmatpush1.bf16.msra.mxu0 0
        %1244 = vmatprep.mubr.bf16.mxu0 0
        %1245 = vmatmul.mubr.bf16.gmra.mrb[0].mxu0 %v1207
        %v1246 = vpop.f32.mrb[0].mxu0
        %v1247 = vadd.f32 %v1192, %v1246
        %v1248 = vpop.f32.mrb[0].mxu0
        %v1249 = vpop.f32.mrb[0].mxu0
        %v1250 = vadd.f32 %v1195, %v1249
        %v1251 = vpop.f32.mrb[0].mxu0
        %1252 = vmatprep.mubr.bf16.mxu0 0
        %1253 = vmatmul.mubr.bf16.gmra.mrb[0].mxu0 %v1210
        %v1254 = vpop.f32.mrb[0].mxu0
        %v1255 = vadd.f32 %v1200, %v1254
        %v1256 = vpop.f32.mrb[0].mxu0
        %v1257 = vpop.f32.mrb[0].mxu0
        %v1258 = vadd.f32 %v1203, %v1257
        %v1259 = vpop.f32.mrb[0].mxu0
        %1260 = vdwg.mxu0
        %v1261 = vmul.f32 %v1247, 0.5663637
        %v1262 = vmul.f32 %v1250, 0.5663637
        %v1263 = vmul.f32 %v1255, 0.5663637
        %v1264 = vmul.f32 %v1258, 0.5663637
        %v1265 = vmul.f32 %v1247, 0.5987188
        %v1266 = vmul.f32 %v1250, 0.5987188
        %v1267 = vmul.f32 %v1255, 0.5987188
        %v1268 = vmul.f32 %v1258, 0.5987188
        %v1273 = vrot.slane %v1265, 1
        %v1274 = vrot.slane %v1266, 1
        %v1275 = vsel %vm881, %v1273, %v1274
        %v1276 = vrot.slane %v1267, 1
        %v1277 = vrot.slane %v1268, 1
        %v1278 = vsel %vm881, %v1276, %v1277
        %v1283 = vadd.f32 %v1261, %v1275
        %v1284 = vadd.f32 %v1262, %v1274
        %v1285 = vadd.f32 %v1263, %v1278
        %v1286 = vadd.f32 %v1264, %v1277
        %v1291 = vrot.slane %v1261, 2
        %v1292 = vrot.slane %v1262, 2
        %v1293 = vsel %vm1008, %v1291, %v1292
        %v1294 = vrot.slane %v1263, 2
        %v1295 = vrot.slane %v1264, 2
        %v1296 = vsel %vm1008, %v1294, %v1295
        %v1301 = vadd.f32 %v1283, %v1293
        %v1302 = vadd.f32 %v1284, %v1292
        %v1303 = vadd.f32 %v1285, %v1296
        %v1304 = vadd.f32 %v1286, %v1295
        %s1305 = scalar_lea.vmem [#allocation2], 224
        %1306 = vst [vmem:[%s1305] sm:$0xff] %v1301
        %1307 = vst [vmem:[%s1305 + $0x8] sm:$0x3f] %v1302
        %1308 = vst [vmem:[%s1305 + $0x10] sm:$0xff] %v1303
        %1309 = vst [vmem:[%s1305 + $0x18] sm:$0x3f] %v1304
        %v1310 = vld [vmem:[#allocation2] sm:$0xff]
        %v1311 = vld [vmem:[#allocation2 + $0x8] sm:$0x3f]
        %v1312 = vld [vmem:[#allocation2 + $0x10] sm:$0xff]
        %v1313 = vld [vmem:[#allocation2 + $0x18] sm:$0x3f]
        %v1314 = vld [vmem:[#allocation2 + $0x20] sm:$0xff]
        %v1315 = vld [vmem:[#allocation2 + $0x28] sm:$0x3f]
        %v1316 = vld [vmem:[#allocation2 + $0x30] sm:$0xff]
        %v1317 = vld [vmem:[#allocation2 + $0x38] sm:$0x3f]
        %v1318 = vld [vmem:[#allocation2 + $0x40] sm:$0xff]
        %v1319 = vld [vmem:[#allocation2 + $0x48] sm:$0x3f]
        %v1320 = vld [vmem:[#allocation2 + $0x50] sm:$0xff]
        %v1321 = vld [vmem:[#allocation2 + $0x58] sm:$0x3f]
        %v1322 = vld [vmem:[#allocation2 + $0x60] sm:$0xff]
        %v1323 = vld [vmem:[#allocation2 + $0x68] sm:$0x3f]
        %v1324 = vld [vmem:[#allocation2 + $0x70] sm:$0xff]
        %v1325 = vld [vmem:[#allocation2 + $0x78] sm:$0x3f]
        %v1326 = vld [vmem:[#allocation2 + $0x80] sm:$0xff]
        %v1327 = vld [vmem:[#allocation2 + $0x88] sm:$0x3f]
        %v1328 = vld [vmem:[#allocation2 + $0x90] sm:$0xff]
        %v1329 = vld [vmem:[#allocation2 + $0x98] sm:$0x3f]
        %v1330 = vld [vmem:[#allocation2 + $0xa0] sm:$0xff]
        %v1331 = vld [vmem:[#allocation2 + $0xa8] sm:$0x3f]
        %v1332 = vld [vmem:[#allocation2 + $0xb0] sm:$0xff]
        %v1333 = vld [vmem:[#allocation2 + $0xb8] sm:$0x3f]
        %v1334 = vld [vmem:[#allocation2 + $0xc0] sm:$0xff]
        %v1335 = vld [vmem:[#allocation2 + $0xc8] sm:$0x3f]
        %v1336 = vld [vmem:[#allocation2 + $0xd0] sm:$0xff]
        %v1337 = vld [vmem:[#allocation2 + $0xd8] sm:$0x3f]
        %s1338 = scalar_lea.vmem [#allocation2], 16
        %v1339 = vld [vmem:[%s1338] sm:$0xff]
        %v1340 = vld [vmem:[%s1338 + $0x8] sm:$0x3f]
        %v1341 = vld [vmem:[%s1338 + $0x10] sm:$0xff]
        %v1342 = vld [vmem:[%s1338 + $0x18] sm:$0x3f]
        %v1343 = vld [vmem:[%s1338 + $0x20] sm:$0xff]
        %v1344 = vld [vmem:[%s1338 + $0x28] sm:$0x3f]
        %v1345 = vld [vmem:[%s1338 + $0x30] sm:$0xff]
        %v1346 = vld [vmem:[%s1338 + $0x38] sm:$0x3f]
        %v1347 = vld [vmem:[%s1338 + $0x40] sm:$0xff]
        %v1348 = vld [vmem:[%s1338 + $0x48] sm:$0x3f]
        %v1349 = vld [vmem:[%s1338 + $0x50] sm:$0xff]
        %v1350 = vld [vmem:[%s1338 + $0x58] sm:$0x3f]
        %v1351 = vld [vmem:[%s1338 + $0x60] sm:$0xff]
        %v1352 = vld [vmem:[%s1338 + $0x68] sm:$0x3f]
        %v1353 = vld [vmem:[%s1338 + $0x70] sm:$0xff]
        %v1354 = vld [vmem:[%s1338 + $0x78] sm:$0x3f]
        %v1355 = vld [vmem:[%s1338 + $0x80] sm:$0xff]
        %v1356 = vld [vmem:[%s1338 + $0x88] sm:$0x3f]
        %v1357 = vld [vmem:[%s1338 + $0x90] sm:$0xff]
        %v1358 = vld [vmem:[%s1338 + $0x98] sm:$0x3f]
        %v1359 = vld [vmem:[%s1338 + $0xa0] sm:$0xff]
        %v1360 = vld [vmem:[%s1338 + $0xa8] sm:$0x3f]
        %v1361 = vld [vmem:[%s1338 + $0xb0] sm:$0xff]
        %v1362 = vld [vmem:[%s1338 + $0xb8] sm:$0x3f]
        %v1363 = vld [vmem:[%s1338 + $0xc0] sm:$0xff]
        %v1364 = vld [vmem:[%s1338 + $0xc8] sm:$0x3f]
        %v1365 = vld [vmem:[%s1338 + $0xd0] sm:$0xff]
        %v1366 = vld [vmem:[%s1338 + $0xd8] sm:$0x3f]
        %v1367 = vadd.f32 %v1310, %v1339
        %v1368 = vadd.f32 %v1311, %v1340
        %v1369 = vadd.f32 %v1312, %v1341
        %v1370 = vadd.f32 %v1313, %v1342
        %v1371 = vadd.f32 %v1314, %v1343
        %v1372 = vadd.f32 %v1315, %v1344
        %v1373 = vadd.f32 %v1316, %v1345
        %v1374 = vadd.f32 %v1317, %v1346
        %v1375 = vadd.f32 %v1318, %v1347
        %v1376 = vadd.f32 %v1319, %v1348
        %v1377 = vadd.f32 %v1320, %v1349
        %v1378 = vadd.f32 %v1321, %v1350
        %v1379 = vadd.f32 %v1322, %v1351
        %v1380 = vadd.f32 %v1323, %v1352
        %v1381 = vadd.f32 %v1324, %v1353
        %v1382 = vadd.f32 %v1325, %v1354
        %v1383 = vadd.f32 %v1326, %v1355
        %v1384 = vadd.f32 %v1327, %v1356
        %v1385 = vadd.f32 %v1328, %v1357
        %v1386 = vadd.f32 %v1329, %v1358
        %v1387 = vadd.f32 %v1330, %v1359
        %v1388 = vadd.f32 %v1331, %v1360
        %v1389 = vadd.f32 %v1332, %v1361
        %v1390 = vadd.f32 %v1333, %v1362
        %v1391 = vadd.f32 %v1334, %v1363
        %v1392 = vadd.f32 %v1335, %v1364
        %v1393 = vadd.f32 %v1336, %v1365
        %v1394 = vadd.f32 %v1337, %v1366
        %s1395 = scalar_lea.vmem [#allocation2], 32
        %v1396 = vld [vmem:[%s1395] sm:$0xff]
        %v1397 = vld [vmem:[%s1395 + $0x8] sm:$0x3f]
        %v1398 = vld [vmem:[%s1395 + $0x10] sm:$0xff]
        %v1399 = vld [vmem:[%s1395 + $0x18] sm:$0x3f]
        %v1400 = vld [vmem:[%s1395 + $0x20] sm:$0xff]
        %v1401 = vld [vmem:[%s1395 + $0x28] sm:$0x3f]
        %v1402 = vld [vmem:[%s1395 + $0x30] sm:$0xff]
        %v1403 = vld [vmem:[%s1395 + $0x38] sm:$0x3f]
        %v1404 = vld [vmem:[%s1395 + $0x40] sm:$0xff]
        %v1405 = vld [vmem:[%s1395 + $0x48] sm:$0x3f]
        %v1406 = vld [vmem:[%s1395 + $0x50] sm:$0xff]
        %v1407 = vld [vmem:[%s1395 + $0x58] sm:$0x3f]
        %v1408 = vld [vmem:[%s1395 + $0x60] sm:$0xff]
        %v1409 = vld [vmem:[%s1395 + $0x68] sm:$0x3f]
        %v1410 = vld [vmem:[%s1395 + $0x70] sm:$0xff]
        %v1411 = vld [vmem:[%s1395 + $0x78] sm:$0x3f]
        %v1412 = vld [vmem:[%s1395 + $0x80] sm:$0xff]
        %v1413 = vld [vmem:[%s1395 + $0x88] sm:$0x3f]
        %v1414 = vld [vmem:[%s1395 + $0x90] sm:$0xff]
        %v1415 = vld [vmem:[%s1395 + $0x98] sm:$0x3f]
        %v1416 = vld [vmem:[%s1395 + $0xa0] sm:$0xff]
        %v1417 = vld [vmem:[%s1395 + $0xa8] sm:$0x3f]
        %v1418 = vld [vmem:[%s1395 + $0xb0] sm:$0xff]
        %v1419 = vld [vmem:[%s1395 + $0xb8] sm:$0x3f]
        %v1420 = vld [vmem:[%s1395 + $0xc0] sm:$0xff]
        %v1421 = vld [vmem:[%s1395 + $0xc8] sm:$0x3f]
        %v1422 = vld [vmem:[%s1395 + $0xd0] sm:$0xff]
        %v1423 = vld [vmem:[%s1395 + $0xd8] sm:$0x3f]
        %v1424 = vadd.f32 %v1367, %v1396
        %v1425 = vadd.f32 %v1368, %v1397
        %v1426 = vadd.f32 %v1369, %v1398
        %v1427 = vadd.f32 %v1370, %v1399
        %v1428 = vadd.f32 %v1371, %v1400
        %v1429 = vadd.f32 %v1372, %v1401
        %v1430 = vadd.f32 %v1373, %v1402
        %v1431 = vadd.f32 %v1374, %v1403
        %v1432 = vadd.f32 %v1375, %v1404
        %v1433 = vadd.f32 %v1376, %v1405
        %v1434 = vadd.f32 %v1377, %v1406
        %v1435 = vadd.f32 %v1378, %v1407
        %v1436 = vadd.f32 %v1379, %v1408
        %v1437 = vadd.f32 %v1380, %v1409
        %v1438 = vadd.f32 %v1381, %v1410
        %v1439 = vadd.f32 %v1382, %v1411
        %v1440 = vadd.f32 %v1383, %v1412
        %v1441 = vadd.f32 %v1384, %v1413
        %v1442 = vadd.f32 %v1385, %v1414
        %v1443 = vadd.f32 %v1386, %v1415
        %v1444 = vadd.f32 %v1387, %v1416
        %v1445 = vadd.f32 %v1388, %v1417
        %v1446 = vadd.f32 %v1389, %v1418
        %v1447 = vadd.f32 %v1390, %v1419
        %v1448 = vadd.f32 %v1391, %v1420
        %v1449 = vadd.f32 %v1392, %v1421
        %v1450 = vadd.f32 %v1393, %v1422
        %v1451 = vadd.f32 %v1394, %v1423
        %1452 = vst [vmem:[%s299] sm:$0xff] %v1424
        %1453 = vst [vmem:[%s299 + $0x8] sm:$0x3f] %v1425
        %1454 = vst [vmem:[%s299 + $0x10] sm:$0xff] %v1426
        %1455 = vst [vmem:[%s299 + $0x18] sm:$0x3f] %v1427
        %1456 = vst [vmem:[%s299 + $0x20] sm:$0xff] %v1428
        %1457 = vst [vmem:[%s299 + $0x28] sm:$0x3f] %v1429
        %1458 = vst [vmem:[%s299 + $0x30] sm:$0xff] %v1430
        %1459 = vst [vmem:[%s299 + $0x38] sm:$0x3f] %v1431
        %1460 = vst [vmem:[%s299 + $0x40] sm:$0xff] %v1432
        %1461 = vst [vmem:[%s299 + $0x48] sm:$0x3f] %v1433
        %1462 = vst [vmem:[%s299 + $0x50] sm:$0xff] %v1434
        %1463 = vst [vmem:[%s299 + $0x58] sm:$0x3f] %v1435
        %1464 = vst [vmem:[%s299 + $0x60] sm:$0xff] %v1436
        %1465 = vst [vmem:[%s299 + $0x68] sm:$0x3f] %v1437
        %1466 = vst [vmem:[%s299 + $0x70] sm:$0xff] %v1438
        %1467 = vst [vmem:[%s299 + $0x78] sm:$0x3f] %v1439
        %1468 = vst [vmem:[%s299 + $0x80] sm:$0xff] %v1440
        %1469 = vst [vmem:[%s299 + $0x88] sm:$0x3f] %v1441
        %1470 = vst [vmem:[%s299 + $0x90] sm:$0xff] %v1442
        %1471 = vst [vmem:[%s299 + $0x98] sm:$0x3f] %v1443
        %1472 = vst [vmem:[%s299 + $0xa0] sm:$0xff] %v1444
        %1473 = vst [vmem:[%s299 + $0xa8] sm:$0x3f] %v1445
        %1474 = vst [vmem:[%s299 + $0xb0] sm:$0xff] %v1446
        %1475 = vst [vmem:[%s299 + $0xb8] sm:$0x3f] %v1447
        %1476 = vst [vmem:[%s299 + $0xc0] sm:$0xff] %v1448
        %1477 = vst [vmem:[%s299 + $0xc8] sm:$0x3f] %v1449
        %1478 = vst [vmem:[%s299 + $0xd0] sm:$0xff] %v1450
        %1479 = vst [vmem:[%s299 + $0xd8] sm:$0x3f] %v1451
        %s1480 = smul.u32 14, %s23
        %p1481 = scmp.lt.s32.totalorder %s22, 1
        %s1482 = scalar_select %p1481, %s22, 1
        %p1483 = scmp.lt.s32.totalorder %s1480, 13
        %s1484 = scalar_select %p1483, %s1480, 13
        %s1485 = smul.addr %s1484, 2
        %s1486 = smul.addr %s1482, 28
        %s1487 = sadd.s32 %s1485, %s1486
        %s1488 = smul.addr %s1487, 8
        %s1489 = scalar_lea.vmem %s3, %s1488
        // Predicated region
        $region45: #{tpu_custom_call.1} parent=31 // pred_check
          %p1490 = pneg %p131
        $region46: #{tpu_custom_call.1} parent=31 // pred_check_branch
          %1492 = sbr.rel (%p1490) target = $region48
        $region47: #{tpu_custom_call.1} parent=31 // pred_region
          %s1493 = smul.u32 14, %s23
        $region48: #{tpu_custom_call.1} parent=31 // pred_fallthru
          _
      $region32: #{tpu_custom_call.1} parent=5 // pred_fallthru
        _
      %p1494 = scmp.le.s32.totalorder 2, %s13
      // Predicated region
      $region49: #{tpu_custom_call.1} parent=5 // pred_check
        %p1495 = pneg %p1494
      $region50: #{tpu_custom_call.1} parent=5 // pred_check_branch
        %1497 = sbr.rel (%p1495) target = $region52
      $region51: #{tpu_custom_call.1} parent=5 // pred_region
        %s1498 = ssub.s32 %s13, 2
        // Predicated region
        $region53: #{tpu_custom_call.1} parent=51 // pred_check
          %p1499 = pneg %p137
        $region54: #{tpu_custom_call.1} parent=51 // pred_check_branch
          %1501 = sbr.rel (%p1499) target = $region56
        $region55: #{tpu_custom_call.1} parent=51 // pred_region
          %s1502 = smul.u32 14, %s25
          %p1503 = scmp.lt.s32.totalorder %s24, 1
          %s1504 = scalar_select %p1503, %s24, 1
          %p1505 = scmp.lt.s32.totalorder %s1502, 13
          %s1506 = scalar_select %p1505, %s1502, 13
          %s1507 = smul.addr %s1506, 2
          %s1508 = smul.addr %s1504, 28
          %s1509 = sadd.s32 %s1507, %s1508
          %s1510 = smul.addr %s1509, 8
          %s1511 = scalar_lea.vmem %s3, %s1510
        $region56: #{tpu_custom_call.1} parent=51 // pred_fallthru
          _
      $region52: #{tpu_custom_call.1} parent=5 // pred_fallthru
        _
    $region6: #{tpu_custom_call.1} parent=1 // loop_footer
      %s17 = sadd.s32 1, %s13
    $region7: #{tpu_custom_call.1} parent=1 // loop_footer_branch
      %12 = sbr.rel target = $region3
    $region8: #{tpu_custom_call.1} parent=1 // loop_exit
      _
    %1512 = vsyncpa [#allocation4], 1
    %s1513 = scalar_lea.sflag [#allocation4], 1
    %1514 = vsyncpa %s1513, 1
    %1515 = vsyncpa [#allocation6], 1
    %s1516 = scalar_lea.sflag [#allocation6], 1
    %1517 = vsyncpa %s1516, 1

</llo_original>
